<compile_context>
chip_gen: v7x
topology: tpu7x:2x2x1
jax: 0.10.0
libtpu: 0.0.40
codegen_flags: <defaults>
</compile_context>

<pallas_src>
import jax
import jax.numpy as jnp
import numpy as np
from jax.experimental import pallas as pl
from jax.experimental.pallas import tpu as pltpu

# ---------------------------------------------------------------------------
# Model constants (the "structure_config" realised for this script)
# ---------------------------------------------------------------------------
OUPS = (12, 12)        # conv out-channels per ConvBlock
KSIZE = 5
STRIDE = 2
PAD = 2
NTAPS = KSIZE * KSIZE  # 25
C0P = 16               # layer-0 out-channel padding (sublane-friendly, NOT 128)
CPAD = 128             # lane-dense padding of the FINAL output channels only
BN_EPS = 1e-5


# ---------------------------------------------------------------------------
# Fused Pallas kernel: both ConvBlocks for one image, intermediate stays in VMEM
# ---------------------------------------------------------------------------
def _fused_lenet_kernel(a0_ref, wm0_ref, b0_ref, sel_ref, w1_ref, b1_ref, o_ref):
    """a0_ref : (1, M0, K0)      bf16  layer-0 im2col rows (M0=OH0*OW0, K0=Cin*25)
       wm0_ref: (K0, C0P)        bf16  layer-0 weight, BN scale folded, Cout->C0P
       b0_ref : (1, C0P)         f32   layer-0 folded BN bias
       sel_ref: (NTAPS*M1, M0)   bf16  0/1 layer-1 patch-selection (zero rows = pad)
       w1_ref : (NTAPS, C0P, CPAD) bf16 layer-1 weight taps (K_eff = 25*12 = 300)
       b1_ref : (1, CPAD)        f32
       o_ref  : (1, M1, CPAD)    f32"""
    m1 = o_ref.shape[1]
    n_out = o_ref.shape[2]
    ntaps = w1_ref.shape[0]

    # Layer 0: conv-as-matmul + folded BN affine + ReLU (activation kept as bf16).
    h = jnp.dot(a0_ref[0], wm0_ref[...], preferred_element_type=jnp.float32)
    h = jnp.maximum(h + b0_ref[...], 0.0).astype(jnp.bfloat16)            # (M0, C0P)

    # Layer-1 patch extraction entirely in VMEM: stride-2 gather + zero padding
    # expressed as a single 0/1 selection matmul; rows grouped by (kh, kw) tap.
    taps = jnp.dot(sel_ref[...], h, preferred_element_type=jnp.float32)   # (25*M1, C0P)
    taps = taps.astype(jnp.bfloat16)

    # Layer 1: direct conv = sum of 25 small tap matmuls, f32 accumulation.
    acc = jnp.zeros((m1, n_out), jnp.float32)
    for t in range(ntaps):                                  # static, unrolled
        acc = acc + jnp.dot(taps[t * m1:(t + 1) * m1, :], w1_ref[t],
                            preferred_element_type=jnp.float32)
    o_ref[0] = jnp.maximum(acc + b1_ref[...], 0.0).astype(o_ref.dtype)


def fused_lenet_bottom(a0, wm0, b0, sel, w1t, b1):
    """a0: (N, M0, K0) bf16 -> (N, M1, CPAD) f32, one image per grid program."""
    n, m0, k0 = a0.shape
    m1 = sel.shape[0] // NTAPS
    return pl.pallas_call(
        _fused_lenet_kernel,
        out_shape=jax.ShapeDtypeStruct((n, m1, CPAD), jnp.float32),
        grid=(n,),
        in_specs=[
            pl.BlockSpec((1, m0, k0), lambda i: (i, 0, 0)),        # per-image A0 tile
            pl.BlockSpec((k0, C0P), lambda i: (0, 0)),             # resident weights
            pl.BlockSpec((1, C0P), lambda i: (0, 0)),
            pl.BlockSpec((NTAPS * m1, m0), lambda i: (0, 0)),
            pl.BlockSpec((NTAPS, C0P, CPAD), lambda i: (0, 0, 0)),
            pl.BlockSpec((1, CPAD), lambda i: (0, 0)),
        ],
        out_specs=pl.BlockSpec((1, m1, CPAD), lambda i: (i, 0, 0)),
        compiler_params=pltpu.CompilerParams(
            dimension_semantics=("parallel",),   # grid >= 2 when batch >= 2 -> megacore
        ),
    )(a0, wm0, b0, sel, w1t, b1)


# ---------------------------------------------------------------------------
# Glue: layer-0 NHWC patch extraction (single XLA op) + forward
# ---------------------------------------------------------------------------
def _extract_patches_nhwc(x_nhwc, k, stride, pad):
    """(N,H,W,C) -> (N, OH*OW, C*k*k), feature order (c, kh, kw)."""
    patches = jax.lax.conv_general_dilated_patches(
        x_nhwc, filter_shape=(k, k), window_strides=(stride, stride),
        padding=((pad, pad), (pad, pad)),
        dimension_numbers=("NHWC", "HWIO", "NHWC"))
    n, oh, ow, f = patches.shape
    return patches.reshape(n, oh * ow, f), oh, ow


@jax.jit
def lenet_conv_bottom_forward(x_nchw, params):
    n = x_nchw.shape[0]
    c1 = OUPS[1]
    x = jnp.transpose(x_nchw, (0, 2, 3, 1)).astype(jnp.bfloat16)     # NHWC bf16 once
    a0, _, _ = _extract_patches_nhwc(x, KSIZE, STRIDE, PAD)          # (N, M0, Cin*25)
    y = fused_lenet_bottom(a0, params["wm0"], params["b0"],
                           params["sel"], params["w1t"], params["b1"])  # (N, M1, 128)
    y = y[..., :c1]                                                  # drop lane padding
    # PyTorch NCHW-order flatten: (N, C, OH1, OW1).view(N, -1)
    return jnp.transpose(y, (0, 2, 1)).reshape(n, -1)


# ---------------------------------------------------------------------------
# Parameter construction (all folding / padding / casting happens ONCE here)
# ---------------------------------------------------------------------------
def _conv_out(size):
    return (size + 2 * PAD - KSIZE) // STRIDE + 1


def _build_selection_matrix(oh0, ow0, oh1, ow1):
    """0/1 matrix S so that (S @ h) stacks the 25 layer-1 taps; zero rows = padding."""
    sel = np.zeros((NTAPS * oh1 * ow1, oh0 * ow0), np.float32)
    for kh in range(KSIZE):
        for kw in range(KSIZE):
            t = kh * KSIZE + kw
            for oy in range(oh1):
                for ox in range(ow1):
                    iy = STRIDE * oy + kh - PAD
                    ix = STRIDE * ox + kw - PAD
                    if 0 <= iy < oh0 and 0 <= ix < ow0:
                        sel[t * oh1 * ow1 + oy * ow1 + ox, iy * ow0 + ix] = 1.0
    return jnp.asarray(sel, jnp.bfloat16)


def init_params(in_channels, in_spatial, key):
    k0, k1, k2, k3 = jax.random.split(key, 4)
    c0, c1 = OUPS
    oh0 = _conv_out(in_spatial)          # 8 for in_spatial=16
    oh1 = _conv_out(oh0)                 # 4

    w0 = 0.1 * jax.random.normal(k0, (c0, in_channels, KSIZE, KSIZE), jnp.float32)
    w1 = 0.1 * jax.random.normal(k1, (c1, c0, KSIZE, KSIZE), jnp.float32)

    # Layer 0: BatchNorm2d (eval mode) with deterministic, non-trivial stats.
    gamma0 = 1.0 + 0.05 * jnp.arange(c0, dtype=jnp.float32)
    beta0 = 0.01 * jnp.arange(c0, dtype=jnp.float32)
    rmean0 = 0.02 * jax.random.normal(k2, (c0,), jnp.float32)
    rvar0 = 1.0 + 0.1 * jnp.abs(jax.random.normal(k3, (c0,), jnp.float32))
    scale0 = gamma0 / jnp.sqrt(rvar0 + BN_EPS)
    bias0 = beta0 - rmean0 * scale0

    # Layer-0 matmul weight: rows ordered (ci,kh,kw) to match conv_general_dilated_patches,
    # BN scale folded, Cout padded 12 -> 16 (zero cols give exactly-zero pad channels).
    wm0 = jnp.transpose(w0, (1, 2, 3, 0)).reshape(in_channels * NTAPS, c0)
    wm0 = wm0 * scale0[None, :]
    wm0 = jnp.pad(wm0, ((0, 0), (0, C0P - c0))).astype(jnp.bfloat16)
    b0 = jnp.pad(bias0.reshape(1, c0), ((0, 0), (0, C0P - c0))).astype(jnp.float32)

    # Layer-1 weight as 25 (kh,kw) taps: (25, C0P, CPAD).  Input channels padded only
    # 12 -> 16 with zero rows (effective K = 300, not 3200); Cout lane-padded to 128.
    w1t = jnp.transpose(w1, (2, 3, 1, 0)).reshape(NTAPS, c0, c1)
    w1t = jnp.pad(w1t, ((0, 0), (0, C0P - c0), (0, CPAD - c1))).astype(jnp.bfloat16)
    b1 = jnp.zeros((1, CPAD), jnp.float32)     # second ConvBlock: no norm, no bias

    sel = _build_selection_matrix(oh0, oh0, oh1, oh1)

    params = {"wm0": wm0, "b0": b0, "w1t": w1t, "b1": b1, "sel": sel}
    ref = {"w0": w0, "w1": w1, "gamma0": gamma0, "beta0": beta0,
           "rmean0": rmean0, "rvar0": rvar0}
    return params, ref


# ---------------------------------------------------------------------------
# Pure-JAX reference (same bf16 input/weight/activation rounding, f32 math)
# ---------------------------------------------------------------------------
def reference_forward(x_nchw, ref):
    f32 = jnp.float32
    dn = ("NCHW", "OIHW", "NCHW")
    pad = ((PAD, PAD), (PAD, PAD))

    scale0 = ref["gamma0"] / jnp.sqrt(ref["rvar0"] + BN_EPS)
    bias0 = ref["beta0"] - ref["rmean0"] * scale0
    w0_eff = (ref["w0"] * scale0[:, None, None, None]).astype(jnp.bfloat16).astype(f32)
    w1_eff = ref["w1"].astype(jnp.bfloat16).astype(f32)

    x = x_nchw.astype(jnp.bfloat16).astype(f32)
    y = jax.lax.conv_general_dilated(x, w0_eff, (STRIDE, STRIDE), pad,
                                     dimension_numbers=dn)
    y = jnp.maximum(y + bias0[None, :, None, None], 0.0)
    y = y.astype(jnp.bfloat16).astype(f32)        # kernel keeps layer-0 act in bf16
    y = jax.lax.conv_general_dilated(y, w1_eff, (STRIDE, STRIDE), pad,
                                     dimension_numbers=dn)
    y = jnp.maximum(y, 0.0)
    return y.reshape(y.shape[0], -1)


if __name__ == "__main__":
    key = jax.random.PRNGKey(0)
    kx, kp = jax.random.split(key)

    batch, in_channels, spatial = 2, 4, 16
    x = jax.random.normal(kx, (batch, in_channels, spatial, spatial), jnp.float32)
    params, ref = init_params(in_channels, spatial, kp)

    out = lenet_conv_bottom_forward(x, params)
    out = jax.block_until_ready(out)

    # (16+4-5)//2+1 = 8 ; (8+4-5)//2+1 = 4 ; NCHW flatten -> 12*4*4 = 192
    assert out.shape == (batch, OUPS[1] * 4 * 4), out.shape
    assert bool(jnp.all(out >= 0.0))              # ReLU at the end of both blocks

    ref_out = reference_forward(x, ref)
    max_err = float(jnp.max(jnp.abs(out - ref_out)))
    assert max_err < 5e-2, f"max abs err vs reference: {max_err}"

    print("KERNEL_OK")
</pallas_src>

<mosaic_0001>
module attributes {stable_mosaic.version = 11 : i64} {
  func.func @_fused_lenet_kernel(%arg0: i32, %arg1: memref<1x64x100xbf16, #tpu.memory_space<vmem>>, %arg2: memref<100x16xbf16, #tpu.memory_space<vmem>>, %arg3: memref<1x16xf32, #tpu.memory_space<vmem>>, %arg4: memref<400x64xbf16, #tpu.memory_space<vmem>>, %arg5: memref<25x16x128xbf16, #tpu.memory_space<vmem>>, %arg6: memref<1x128xf32, #tpu.memory_space<vmem>>, %arg7: memref<1x16x128xf32, #tpu.memory_space<vmem>>) attributes {dimension_semantics = [#tpu.dimension_semantics<parallel>], iteration_bounds = array<i64: 2>, scalar_prefetch = 0 : i64, scratch_operands = 0 : i64, tpu.core_type = #tpu.core_type<tc>, window_params = [{transform_indices = @transform_0, window_bounds = array<i64: 1, 64, 100>}, {pipeline_mode = #tpu.pipeline_mode<synchronous>, transform_indices = @transform_1, window_bounds = array<i64: 100, 16>}, {pipeline_mode = #tpu.pipeline_mode<synchronous>, transform_indices = @transform_2, window_bounds = array<i64: 1, 16>}, {pipeline_mode = #tpu.pipeline_mode<synchronous>, transform_indices = @transform_3, window_bounds = array<i64: 400, 64>}, {pipeline_mode = #tpu.pipeline_mode<synchronous>, transform_indices = @transform_4, window_bounds = array<i64: 25, 16, 128>}, {pipeline_mode = #tpu.pipeline_mode<synchronous>, transform_indices = @transform_5, window_bounds = array<i64: 1, 128>}, {transform_indices = @transform_6, window_bounds = array<i64: 1, 16, 128>}]} {
    %c0 = arith.constant 0 : index
    %c0_0 = arith.constant 0 : index
    %c0_1 = arith.constant 0 : index
    %0 = vector.load %arg1[%c0, %c0_0, %c0_1] : memref<1x64x100xbf16, #tpu.memory_space<vmem>>, vector<1x64x100xbf16>
    %1 = vector.shape_cast %0 : vector<1x64x100xbf16> to vector<64x100xbf16>
    %c0_2 = arith.constant 0 : index
    %c0_3 = arith.constant 0 : index
    %2 = vector.load %arg2[%c0_2, %c0_3] : memref<100x16xbf16, #tpu.memory_space<vmem>>, vector<100x16xbf16>
    %cst = arith.constant dense<0.000000e+00> : vector<64x16xf32>
    %3 = tpu.matmul %1, %2, %cst {dimension_numbers = #tpu.dot_dimension_numbers<[1], [0], [0], [1], [0, 0, 1, 1], [], []>} : vector<64x100xbf16>, vector<100x16xbf16>, vector<64x16xf32> -> vector<64x16xf32>
    %c0_4 = arith.constant 0 : index
    %c0_5 = arith.constant 0 : index
    %4 = vector.load %arg3[%c0_4, %c0_5] : memref<1x16xf32, #tpu.memory_space<vmem>>, vector<1x16xf32>
    %5 = vector.broadcast %4 : vector<1x16xf32> to vector<64x16xf32>
    %6 = arith.addf %3, %5 : vector<64x16xf32>
    %cst_6 = arith.constant 0.000000e+00 : f32
    %7 = vector.broadcast %cst_6 : f32 to vector<64x16xf32>
    %8 = arith.maximumf %6, %7 : vector<64x16xf32>
    %9 = arith.truncf %8 : vector<64x16xf32> to vector<64x16xbf16>
    %c0_7 = arith.constant 0 : index
    %c0_8 = arith.constant 0 : index
    %10 = vector.load %arg4[%c0_7, %c0_8] : memref<400x64xbf16, #tpu.memory_space<vmem>>, vector<400x64xbf16>
    %cst_9 = arith.constant dense<0.000000e+00> : vector<400x16xf32>
    %11 = tpu.matmul %10, %9, %cst_9 {dimension_numbers = #tpu.dot_dimension_numbers<[1], [0], [0], [1], [0, 0, 1, 1], [], []>} : vector<400x64xbf16>, vector<64x16xbf16>, vector<400x16xf32> -> vector<400x16xf32>
    %12 = arith.truncf %11 : vector<400x16xf32> to vector<400x16xbf16>
    %cst_10 = arith.constant 0.000000e+00 : f32
    %13 = vector.broadcast %cst_10 : f32 to vector<16x128xf32>
    %14 = vector.extract_strided_slice %12 {offsets = [0, 0], sizes = [16, 16], strides = [1, 1]} : vector<400x16xbf16> to vector<16x16xbf16>
    %c0_11 = arith.constant 0 : index
    %c0_12 = arith.constant 0 : index
    %c0_13 = arith.constant 0 : index
    %15 = vector.load %arg5[%c0_11, %c0_12, %c0_13] : memref<25x16x128xbf16, #tpu.memory_space<vmem>>, vector<1x16x128xbf16>
    %16 = vector.shape_cast %15 : vector<1x16x128xbf16> to vector<16x128xbf16>
    %cst_14 = arith.constant dense<0.000000e+00> : vector<16x128xf32>
    %17 = tpu.matmul %14, %16, %cst_14 {dimension_numbers = #tpu.dot_dimension_numbers<[1], [0], [0], [1], [0, 0, 1, 1], [], []>} : vector<16x16xbf16>, vector<16x128xbf16>, vector<16x128xf32> -> vector<16x128xf32>
    %18 = arith.addf %13, %17 : vector<16x128xf32>
    %19 = vector.extract_strided_slice %12 {offsets = [16, 0], sizes = [16, 16], strides = [1, 1]} : vector<400x16xbf16> to vector<16x16xbf16>
    %c1 = arith.constant 1 : index
    %c0_15 = arith.constant 0 : index
    %c0_16 = arith.constant 0 : index
    %20 = vector.load %arg5[%c1, %c0_15, %c0_16] : memref<25x16x128xbf16, #tpu.memory_space<vmem>>, vector<1x16x128xbf16>
    %21 = vector.shape_cast %20 : vector<1x16x128xbf16> to vector<16x128xbf16>
    %cst_17 = arith.constant dense<0.000000e+00> : vector<16x128xf32>
    %22 = tpu.matmul %19, %21, %cst_17 {dimension_numbers = #tpu.dot_dimension_numbers<[1], [0], [0], [1], [0, 0, 1, 1], [], []>} : vector<16x16xbf16>, vector<16x128xbf16>, vector<16x128xf32> -> vector<16x128xf32>
    %23 = arith.addf %18, %22 : vector<16x128xf32>
    %24 = vector.extract_strided_slice %12 {offsets = [32, 0], sizes = [16, 16], strides = [1, 1]} : vector<400x16xbf16> to vector<16x16xbf16>
    %c2 = arith.constant 2 : index
    %c0_18 = arith.constant 0 : index
    %c0_19 = arith.constant 0 : index
    %25 = vector.load %arg5[%c2, %c0_18, %c0_19] : memref<25x16x128xbf16, #tpu.memory_space<vmem>>, vector<1x16x128xbf16>
    %26 = vector.shape_cast %25 : vector<1x16x128xbf16> to vector<16x128xbf16>
    %cst_20 = arith.constant dense<0.000000e+00> : vector<16x128xf32>
    %27 = tpu.matmul %24, %26, %cst_20 {dimension_numbers = #tpu.dot_dimension_numbers<[1], [0], [0], [1], [0, 0, 1, 1], [], []>} : vector<16x16xbf16>, vector<16x128xbf16>, vector<16x128xf32> -> vector<16x128xf32>
    %28 = arith.addf %23, %27 : vector<16x128xf32>
    %29 = vector.extract_strided_slice %12 {offsets = [48, 0], sizes = [16, 16], strides = [1, 1]} : vector<400x16xbf16> to vector<16x16xbf16>
    %c3 = arith.constant 3 : index
    %c0_21 = arith.constant 0 : index
    %c0_22 = arith.constant 0 : index
    %30 = vector.load %arg5[%c3, %c0_21, %c0_22] : memref<25x16x128xbf16, #tpu.memory_space<vmem>>, vector<1x16x128xbf16>
    %31 = vector.shape_cast %30 : vector<1x16x128xbf16> to vector<16x128xbf16>
    %cst_23 = arith.constant dense<0.000000e+00> : vector<16x128xf32>
    %32 = tpu.matmul %29, %31, %cst_23 {dimension_numbers = #tpu.dot_dimension_numbers<[1], [0], [0], [1], [0, 0, 1, 1], [], []>} : vector<16x16xbf16>, vector<16x128xbf16>, vector<16x128xf32> -> vector<16x128xf32>
    %33 = arith.addf %28, %32 : vector<16x128xf32>
    %34 = vector.extract_strided_slice %12 {offsets = [64, 0], sizes = [16, 16], strides = [1, 1]} : vector<400x16xbf16> to vector<16x16xbf16>
    %c4 = arith.constant 4 : index
    %c0_24 = arith.constant 0 : index
    %c0_25 = arith.constant 0 : index
    %35 = vector.load %arg5[%c4, %c0_24, %c0_25] : memref<25x16x128xbf16, #tpu.memory_space<vmem>>, vector<1x16x128xbf16>
    %36 = vector.shape_cast %35 : vector<1x16x128xbf16> to vector<16x128xbf16>
    %cst_26 = arith.constant dense<0.000000e+00> : vector<16x128xf32>
    %37 = tpu.matmul %34, %36, %cst_26 {dimension_numbers = #tpu.dot_dimension_numbers<[1], [0], [0], [1], [0, 0, 1, 1], [], []>} : vector<16x16xbf16>, vector<16x128xbf16>, vector<16x128xf32> -> vector<16x128xf32>
    %38 = arith.addf %33, %37 : vector<16x128xf32>
    %39 = vector.extract_strided_slice %12 {offsets = [80, 0], sizes = [16, 16], strides = [1, 1]} : vector<400x16xbf16> to vector<16x16xbf16>
    %c5 = arith.constant 5 : index
    %c0_27 = arith.constant 0 : index
    %c0_28 = arith.constant 0 : index
    %40 = vector.load %arg5[%c5, %c0_27, %c0_28] : memref<25x16x128xbf16, #tpu.memory_space<vmem>>, vector<1x16x128xbf16>
    %41 = vector.shape_cast %40 : vector<1x16x128xbf16> to vector<16x128xbf16>
    %cst_29 = arith.constant dense<0.000000e+00> : vector<16x128xf32>
    %42 = tpu.matmul %39, %41, %cst_29 {dimension_numbers = #tpu.dot_dimension_numbers<[1], [0], [0], [1], [0, 0, 1, 1], [], []>} : vector<16x16xbf16>, vector<16x128xbf16>, vector<16x128xf32> -> vector<16x128xf32>
    %43 = arith.addf %38, %42 : vector<16x128xf32>
    %44 = vector.extract_strided_slice %12 {offsets = [96, 0], sizes = [16, 16], strides = [1, 1]} : vector<400x16xbf16> to vector<16x16xbf16>
    %c6 = arith.constant 6 : index
    %c0_30 = arith.constant 0 : index
    %c0_31 = arith.constant 0 : index
    %45 = vector.load %arg5[%c6, %c0_30, %c0_31] : memref<25x16x128xbf16, #tpu.memory_space<vmem>>, vector<1x16x128xbf16>
    %46 = vector.shape_cast %45 : vector<1x16x128xbf16> to vector<16x128xbf16>
    %cst_32 = arith.constant dense<0.000000e+00> : vector<16x128xf32>
    %47 = tpu.matmul %44, %46, %cst_32 {dimension_numbers = #tpu.dot_dimension_numbers<[1], [0], [0], [1], [0, 0, 1, 1], [], []>} : vector<16x16xbf16>, vector<16x128xbf16>, vector<16x128xf32> -> vector<16x128xf32>
    %48 = arith.addf %43, %47 : vector<16x128xf32>
    %49 = vector.extract_strided_slice %12 {offsets = [112, 0], sizes = [16, 16], strides = [1, 1]} : vector<400x16xbf16> to vector<16x16xbf16>
    %c7 = arith.constant 7 : index
    %c0_33 = arith.constant 0 : index
    %c0_34 = arith.constant 0 : index
    %50 = vector.load %arg5[%c7, %c0_33, %c0_34] : memref<25x16x128xbf16, #tpu.memory_space<vmem>>, vector<1x16x128xbf16>
    %51 = vector.shape_cast %50 : vector<1x16x128xbf16> to vector<16x128xbf16>
    %cst_35 = arith.constant dense<0.000000e+00> : vector<16x128xf32>
    %52 = tpu.matmul %49, %51, %cst_35 {dimension_numbers = #tpu.dot_dimension_numbers<[1], [0], [0], [1], [0, 0, 1, 1], [], []>} : vector<16x16xbf16>, vector<16x128xbf16>, vector<16x128xf32> -> vector<16x128xf32>
    %53 = arith.addf %48, %52 : vector<16x128xf32>
    %54 = vector.extract_strided_slice %12 {offsets = [128, 0], sizes = [16, 16], strides = [1, 1]} : vector<400x16xbf16> to vector<16x16xbf16>
    %c8 = arith.constant 8 : index
    %c0_36 = arith.constant 0 : index
    %c0_37 = arith.constant 0 : index
    %55 = vector.load %arg5[%c8, %c0_36, %c0_37] : memref<25x16x128xbf16, #tpu.memory_space<vmem>>, vector<1x16x128xbf16>
    %56 = vector.shape_cast %55 : vector<1x16x128xbf16> to vector<16x128xbf16>
    %cst_38 = arith.constant dense<0.000000e+00> : vector<16x128xf32>
    %57 = tpu.matmul %54, %56, %cst_38 {dimension_numbers = #tpu.dot_dimension_numbers<[1], [0], [0], [1], [0, 0, 1, 1], [], []>} : vector<16x16xbf16>, vector<16x128xbf16>, vector<16x128xf32> -> vector<16x128xf32>
    %58 = arith.addf %53, %57 : vector<16x128xf32>
    %59 = vector.extract_strided_slice %12 {offsets = [144, 0], sizes = [16, 16], strides = [1, 1]} : vector<400x16xbf16> to vector<16x16xbf16>
    %c9 = arith.constant 9 : index
    %c0_39 = arith.constant 0 : index
    %c0_40 = arith.constant 0 : index
    %60 = vector.load %arg5[%c9, %c0_39, %c0_40] : memref<25x16x128xbf16, #tpu.memory_space<vmem>>, vector<1x16x128xbf16>
    %61 = vector.shape_cast %60 : vector<1x16x128xbf16> to vector<16x128xbf16>
    %cst_41 = arith.constant dense<0.000000e+00> : vector<16x128xf32>
    %62 = tpu.matmul %59, %61, %cst_41 {dimension_numbers = #tpu.dot_dimension_numbers<[1], [0], [0], [1], [0, 0, 1, 1], [], []>} : vector<16x16xbf16>, vector<16x128xbf16>, vector<16x128xf32> -> vector<16x128xf32>
    %63 = arith.addf %58, %62 : vector<16x128xf32>
    %64 = vector.extract_strided_slice %12 {offsets = [160, 0], sizes = [16, 16], strides = [1, 1]} : vector<400x16xbf16> to vector<16x16xbf16>
    %c10 = arith.constant 10 : index
    %c0_42 = arith.constant 0 : index
    %c0_43 = arith.constant 0 : index
    %65 = vector.load %arg5[%c10, %c0_42, %c0_43] : memref<25x16x128xbf16, #tpu.memory_space<vmem>>, vector<1x16x128xbf16>
    %66 = vector.shape_cast %65 : vector<1x16x128xbf16> to vector<16x128xbf16>
    %cst_44 = arith.constant dense<0.000000e+00> : vector<16x128xf32>
    %67 = tpu.matmul %64, %66, %cst_44 {dimension_numbers = #tpu.dot_dimension_numbers<[1], [0], [0], [1], [0, 0, 1, 1], [], []>} : vector<16x16xbf16>, vector<16x128xbf16>, vector<16x128xf32> -> vector<16x128xf32>
    %68 = arith.addf %63, %67 : vector<16x128xf32>
    %69 = vector.extract_strided_slice %12 {offsets = [176, 0], sizes = [16, 16], strides = [1, 1]} : vector<400x16xbf16> to vector<16x16xbf16>
    %c11 = arith.constant 11 : index
    %c0_45 = arith.constant 0 : index
    %c0_46 = arith.constant 0 : index
    %70 = vector.load %arg5[%c11, %c0_45, %c0_46] : memref<25x16x128xbf16, #tpu.memory_space<vmem>>, vector<1x16x128xbf16>
    %71 = vector.shape_cast %70 : vector<1x16x128xbf16> to vector<16x128xbf16>
    %cst_47 = arith.constant dense<0.000000e+00> : vector<16x128xf32>
    %72 = tpu.matmul %69, %71, %cst_47 {dimension_numbers = #tpu.dot_dimension_numbers<[1], [0], [0], [1], [0, 0, 1, 1], [], []>} : vector<16x16xbf16>, vector<16x128xbf16>, vector<16x128xf32> -> vector<16x128xf32>
    %73 = arith.addf %68, %72 : vector<16x128xf32>
    %74 = vector.extract_strided_slice %12 {offsets = [192, 0], sizes = [16, 16], strides = [1, 1]} : vector<400x16xbf16> to vector<16x16xbf16>
    %c12 = arith.constant 12 : index
    %c0_48 = arith.constant 0 : index
    %c0_49 = arith.constant 0 : index
    %75 = vector.load %arg5[%c12, %c0_48, %c0_49] : memref<25x16x128xbf16, #tpu.memory_space<vmem>>, vector<1x16x128xbf16>
    %76 = vector.shape_cast %75 : vector<1x16x128xbf16> to vector<16x128xbf16>
    %cst_50 = arith.constant dense<0.000000e+00> : vector<16x128xf32>
    %77 = tpu.matmul %74, %76, %cst_50 {dimension_numbers = #tpu.dot_dimension_numbers<[1], [0], [0], [1], [0, 0, 1, 1], [], []>} : vector<16x16xbf16>, vector<16x128xbf16>, vector<16x128xf32> -> vector<16x128xf32>
    %78 = arith.addf %73, %77 : vector<16x128xf32>
    %79 = vector.extract_strided_slice %12 {offsets = [208, 0], sizes = [16, 16], strides = [1, 1]} : vector<400x16xbf16> to vector<16x16xbf16>
    %c13 = arith.constant 13 : index
    %c0_51 = arith.constant 0 : index
    %c0_52 = arith.constant 0 : index
    %80 = vector.load %arg5[%c13, %c0_51, %c0_52] : memref<25x16x128xbf16, #tpu.memory_space<vmem>>, vector<1x16x128xbf16>
    %81 = vector.shape_cast %80 : vector<1x16x128xbf16> to vector<16x128xbf16>
    %cst_53 = arith.constant dense<0.000000e+00> : vector<16x128xf32>
    %82 = tpu.matmul %79, %81, %cst_53 {dimension_numbers = #tpu.dot_dimension_numbers<[1], [0], [0], [1], [0, 0, 1, 1], [], []>} : vector<16x16xbf16>, vector<16x128xbf16>, vector<16x128xf32> -> vector<16x128xf32>
    %83 = arith.addf %78, %82 : vector<16x128xf32>
    %84 = vector.extract_strided_slice %12 {offsets = [224, 0], sizes = [16, 16], strides = [1, 1]} : vector<400x16xbf16> to vector<16x16xbf16>
    %c14 = arith.constant 14 : index
    %c0_54 = arith.constant 0 : index
    %c0_55 = arith.constant 0 : index
    %85 = vector.load %arg5[%c14, %c0_54, %c0_55] : memref<25x16x128xbf16, #tpu.memory_space<vmem>>, vector<1x16x128xbf16>
    %86 = vector.shape_cast %85 : vector<1x16x128xbf16> to vector<16x128xbf16>
    %cst_56 = arith.constant dense<0.000000e+00> : vector<16x128xf32>
    %87 = tpu.matmul %84, %86, %cst_56 {dimension_numbers = #tpu.dot_dimension_numbers<[1], [0], [0], [1], [0, 0, 1, 1], [], []>} : vector<16x16xbf16>, vector<16x128xbf16>, vector<16x128xf32> -> vector<16x128xf32>
    %88 = arith.addf %83, %87 : vector<16x128xf32>
    %89 = vector.extract_strided_slice %12 {offsets = [240, 0], sizes = [16, 16], strides = [1, 1]} : vector<400x16xbf16> to vector<16x16xbf16>
    %c15 = arith.constant 15 : index
    %c0_57 = arith.constant 0 : index
    %c0_58 = arith.constant 0 : index
    %90 = vector.load %arg5[%c15, %c0_57, %c0_58] : memref<25x16x128xbf16, #tpu.memory_space<vmem>>, vector<1x16x128xbf16>
    %91 = vector.shape_cast %90 : vector<1x16x128xbf16> to vector<16x128xbf16>
    %cst_59 = arith.constant dense<0.000000e+00> : vector<16x128xf32>
    %92 = tpu.matmul %89, %91, %cst_59 {dimension_numbers = #tpu.dot_dimension_numbers<[1], [0], [0], [1], [0, 0, 1, 1], [], []>} : vector<16x16xbf16>, vector<16x128xbf16>, vector<16x128xf32> -> vector<16x128xf32>
    %93 = arith.addf %88, %92 : vector<16x128xf32>
    %94 = vector.extract_strided_slice %12 {offsets = [256, 0], sizes = [16, 16], strides = [1, 1]} : vector<400x16xbf16> to vector<16x16xbf16>
    %c16 = arith.constant 16 : index
    %c0_60 = arith.constant 0 : index
    %c0_61 = arith.constant 0 : index
    %95 = vector.load %arg5[%c16, %c0_60, %c0_61] : memref<25x16x128xbf16, #tpu.memory_space<vmem>>, vector<1x16x128xbf16>
    %96 = vector.shape_cast %95 : vector<1x16x128xbf16> to vector<16x128xbf16>
    %cst_62 = arith.constant dense<0.000000e+00> : vector<16x128xf32>
    %97 = tpu.matmul %94, %96, %cst_62 {dimension_numbers = #tpu.dot_dimension_numbers<[1], [0], [0], [1], [0, 0, 1, 1], [], []>} : vector<16x16xbf16>, vector<16x128xbf16>, vector<16x128xf32> -> vector<16x128xf32>
    %98 = arith.addf %93, %97 : vector<16x128xf32>
    %99 = vector.extract_strided_slice %12 {offsets = [272, 0], sizes = [16, 16], strides = [1, 1]} : vector<400x16xbf16> to vector<16x16xbf16>
    %c17 = arith.constant 17 : index
    %c0_63 = arith.constant 0 : index
    %c0_64 = arith.constant 0 : index
    %100 = vector.load %arg5[%c17, %c0_63, %c0_64] : memref<25x16x128xbf16, #tpu.memory_space<vmem>>, vector<1x16x128xbf16>
    %101 = vector.shape_cast %100 : vector<1x16x128xbf16> to vector<16x128xbf16>
    %cst_65 = arith.constant dense<0.000000e+00> : vector<16x128xf32>
    %102 = tpu.matmul %99, %101, %cst_65 {dimension_numbers = #tpu.dot_dimension_numbers<[1], [0], [0], [1], [0, 0, 1, 1], [], []>} : vector<16x16xbf16>, vector<16x128xbf16>, vector<16x128xf32> -> vector<16x128xf32>
    %103 = arith.addf %98, %102 : vector<16x128xf32>
    %104 = vector.extract_strided_slice %12 {offsets = [288, 0], sizes = [16, 16], strides = [1, 1]} : vector<400x16xbf16> to vector<16x16xbf16>
    %c18 = arith.constant 18 : index
    %c0_66 = arith.constant 0 : index
    %c0_67 = arith.constant 0 : index
    %105 = vector.load %arg5[%c18, %c0_66, %c0_67] : memref<25x16x128xbf16, #tpu.memory_space<vmem>>, vector<1x16x128xbf16>
    %106 = vector.shape_cast %105 : vector<1x16x128xbf16> to vector<16x128xbf16>
    %cst_68 = arith.constant dense<0.000000e+00> : vector<16x128xf32>
    %107 = tpu.matmul %104, %106, %cst_68 {dimension_numbers = #tpu.dot_dimension_numbers<[1], [0], [0], [1], [0, 0, 1, 1], [], []>} : vector<16x16xbf16>, vector<16x128xbf16>, vector<16x128xf32> -> vector<16x128xf32>
    %108 = arith.addf %103, %107 : vector<16x128xf32>
    %109 = vector.extract_strided_slice %12 {offsets = [304, 0], sizes = [16, 16], strides = [1, 1]} : vector<400x16xbf16> to vector<16x16xbf16>
    %c19 = arith.constant 19 : index
    %c0_69 = arith.constant 0 : index
    %c0_70 = arith.constant 0 : index
    %110 = vector.load %arg5[%c19, %c0_69, %c0_70] : memref<25x16x128xbf16, #tpu.memory_space<vmem>>, vector<1x16x128xbf16>
    %111 = vector.shape_cast %110 : vector<1x16x128xbf16> to vector<16x128xbf16>
    %cst_71 = arith.constant dense<0.000000e+00> : vector<16x128xf32>
    %112 = tpu.matmul %109, %111, %cst_71 {dimension_numbers = #tpu.dot_dimension_numbers<[1], [0], [0], [1], [0, 0, 1, 1], [], []>} : vector<16x16xbf16>, vector<16x128xbf16>, vector<16x128xf32> -> vector<16x128xf32>
    %113 = arith.addf %108, %112 : vector<16x128xf32>
    %114 = vector.extract_strided_slice %12 {offsets = [320, 0], sizes = [16, 16], strides = [1, 1]} : vector<400x16xbf16> to vector<16x16xbf16>
    %c20 = arith.constant 20 : index
    %c0_72 = arith.constant 0 : index
    %c0_73 = arith.constant 0 : index
    %115 = vector.load %arg5[%c20, %c0_72, %c0_73] : memref<25x16x128xbf16, #tpu.memory_space<vmem>>, vector<1x16x128xbf16>
    %116 = vector.shape_cast %115 : vector<1x16x128xbf16> to vector<16x128xbf16>
    %cst_74 = arith.constant dense<0.000000e+00> : vector<16x128xf32>
    %117 = tpu.matmul %114, %116, %cst_74 {dimension_numbers = #tpu.dot_dimension_numbers<[1], [0], [0], [1], [0, 0, 1, 1], [], []>} : vector<16x16xbf16>, vector<16x128xbf16>, vector<16x128xf32> -> vector<16x128xf32>
    %118 = arith.addf %113, %117 : vector<16x128xf32>
    %119 = vector.extract_strided_slice %12 {offsets = [336, 0], sizes = [16, 16], strides = [1, 1]} : vector<400x16xbf16> to vector<16x16xbf16>
    %c21 = arith.constant 21 : index
    %c0_75 = arith.constant 0 : index
    %c0_76 = arith.constant 0 : index
    %120 = vector.load %arg5[%c21, %c0_75, %c0_76] : memref<25x16x128xbf16, #tpu.memory_space<vmem>>, vector<1x16x128xbf16>
    %121 = vector.shape_cast %120 : vector<1x16x128xbf16> to vector<16x128xbf16>
    %cst_77 = arith.constant dense<0.000000e+00> : vector<16x128xf32>
    %122 = tpu.matmul %119, %121, %cst_77 {dimension_numbers = #tpu.dot_dimension_numbers<[1], [0], [0], [1], [0, 0, 1, 1], [], []>} : vector<16x16xbf16>, vector<16x128xbf16>, vector<16x128xf32> -> vector<16x128xf32>
    %123 = arith.addf %118, %122 : vector<16x128xf32>
    %124 = vector.extract_strided_slice %12 {offsets = [352, 0], sizes = [16, 16], strides = [1, 1]} : vector<400x16xbf16> to vector<16x16xbf16>
    %c22 = arith.constant 22 : index
    %c0_78 = arith.constant 0 : index
    %c0_79 = arith.constant 0 : index
    %125 = vector.load %arg5[%c22, %c0_78, %c0_79] : memref<25x16x128xbf16, #tpu.memory_space<vmem>>, vector<1x16x128xbf16>
    %126 = vector.shape_cast %125 : vector<1x16x128xbf16> to vector<16x128xbf16>
    %cst_80 = arith.constant dense<0.000000e+00> : vector<16x128xf32>
    %127 = tpu.matmul %124, %126, %cst_80 {dimension_numbers = #tpu.dot_dimension_numbers<[1], [0], [0], [1], [0, 0, 1, 1], [], []>} : vector<16x16xbf16>, vector<16x128xbf16>, vector<16x128xf32> -> vector<16x128xf32>
    %128 = arith.addf %123, %127 : vector<16x128xf32>
    %129 = vector.extract_strided_slice %12 {offsets = [368, 0], sizes = [16, 16], strides = [1, 1]} : vector<400x16xbf16> to vector<16x16xbf16>
    %c23 = arith.constant 23 : index
    %c0_81 = arith.constant 0 : index
    %c0_82 = arith.constant 0 : index
    %130 = vector.load %arg5[%c23, %c0_81, %c0_82] : memref<25x16x128xbf16, #tpu.memory_space<vmem>>, vector<1x16x128xbf16>
    %131 = vector.shape_cast %130 : vector<1x16x128xbf16> to vector<16x128xbf16>
    %cst_83 = arith.constant dense<0.000000e+00> : vector<16x128xf32>
    %132 = tpu.matmul %129, %131, %cst_83 {dimension_numbers = #tpu.dot_dimension_numbers<[1], [0], [0], [1], [0, 0, 1, 1], [], []>} : vector<16x16xbf16>, vector<16x128xbf16>, vector<16x128xf32> -> vector<16x128xf32>
    %133 = arith.addf %128, %132 : vector<16x128xf32>
    %134 = vector.extract_strided_slice %12 {offsets = [384, 0], sizes = [16, 16], strides = [1, 1]} : vector<400x16xbf16> to vector<16x16xbf16>
    %c24 = arith.constant 24 : index
    %c0_84 = arith.constant 0 : index
    %c0_85 = arith.constant 0 : index
    %135 = vector.load %arg5[%c24, %c0_84, %c0_85] : memref<25x16x128xbf16, #tpu.memory_space<vmem>>, vector<1x16x128xbf16>
    %136 = vector.shape_cast %135 : vector<1x16x128xbf16> to vector<16x128xbf16>
    %cst_86 = arith.constant dense<0.000000e+00> : vector<16x128xf32>
    %137 = tpu.matmul %134, %136, %cst_86 {dimension_numbers = #tpu.dot_dimension_numbers<[1], [0], [0], [1], [0, 0, 1, 1], [], []>} : vector<16x16xbf16>, vector<16x128xbf16>, vector<16x128xf32> -> vector<16x128xf32>
    %138 = arith.addf %133, %137 : vector<16x128xf32>
    %c0_87 = arith.constant 0 : index
    %c0_88 = arith.constant 0 : index
    %139 = vector.load %arg6[%c0_87, %c0_88] : memref<1x128xf32, #tpu.memory_space<vmem>>, vector<1x128xf32>
    %140 = vector.broadcast %139 : vector<1x128xf32> to vector<16x128xf32>
    %141 = arith.addf %138, %140 : vector<16x128xf32>
    %cst_89 = arith.constant 0.000000e+00 : f32
    %142 = vector.broadcast %cst_89 : f32 to vector<16x128xf32>
    %143 = arith.maximumf %141, %142 : vector<16x128xf32>
    %c0_90 = arith.constant 0 : index
    %c0_91 = arith.constant 0 : index
    %c0_92 = arith.constant 0 : index
    %144 = vector.load %arg7[%c0_90, %c0_91, %c0_92] : memref<1x16x128xf32, #tpu.memory_space<vmem>>, vector<1x16x128xf32>
    %145 = vector.shape_cast %144 : vector<1x16x128xf32> to vector<16x128xf32>
    %146 = vector.shape_cast %143 : vector<16x128xf32> to vector<1x16x128xf32>
    tpu.vector_store %arg7[%c0_90, %c0_91, %c0_92], %146 {strides = array<i32>} : memref<1x16x128xf32, #tpu.memory_space<vmem>>, vector<1x16x128xf32>,
    return
  }
  func.func @transform_0(%arg0: i32) -> (i32, i32, i32) {
    %c0_i32 = arith.constant 0 : i32
    %c0_i32_0 = arith.constant 0 : i32
    %c0_i32_1 = arith.constant 0 : i32
    return %arg0, %c0_i32, %c0_i32_0 : i32, i32, i32
  }
  func.func @transform_1(%arg0: i32) -> (i32, i32) {
    %c0_i32 = arith.constant 0 : i32
    %c0_i32_0 = arith.constant 0 : i32
    %c0_i32_1 = arith.constant 0 : i32
    return %c0_i32, %c0_i32_0 : i32, i32
  }
  func.func @transform_2(%arg0: i32) -> (i32, i32) {
    %c0_i32 = arith.constant 0 : i32
    %c0_i32_0 = arith.constant 0 : i32
    %c0_i32_1 = arith.constant 0 : i32
    return %c0_i32, %c0_i32_0 : i32, i32
  }
  func.func @transform_3(%arg0: i32) -> (i32, i32) {
    %c0_i32 = arith.constant 0 : i32
    %c0_i32_0 = arith.constant 0 : i32
    %c0_i32_1 = arith.constant 0 : i32
    return %c0_i32, %c0_i32_0 : i32, i32
  }
  func.func @transform_4(%arg0: i32) -> (i32, i32, i32) {
    %c0_i32 = arith.constant 0 : i32
    %c0_i32_0 = arith.constant 0 : i32
    %c0_i32_1 = arith.constant 0 : i32
    %c0_i32_2 = arith.constant 0 : i32
    return %c0_i32, %c0_i32_0, %c0_i32_1 : i32, i32, i32
  }
  func.func @transform_5(%arg0: i32) -> (i32, i32) {
    %c0_i32 = arith.constant 0 : i32
    %c0_i32_0 = arith.constant 0 : i32
    %c0_i32_1 = arith.constant 0 : i32
    return %c0_i32, %c0_i32_0 : i32, i32
  }
  func.func @transform_6(%arg0: i32) -> (i32, i32, i32) {
    %c0_i32 = arith.constant 0 : i32
    %c0_i32_0 = arith.constant 0 : i32
    %c0_i32_1 = arith.constant 0 : i32
    return %arg0, %c0_i32, %c0_i32_0 : i32, i32, i32
  }
}

</mosaic_0001>

<llo_original>
// kernel: lenet_conv_bottom_forward.1
$region0: #{lenet_conv_bottom_forward.1}
  #allocation0 [shape = 'u32[]', space=smem, size = 0x4, offset = 0x4, fixed_abs, tag = 'smem constant byte address 0x4 - core index']
  #allocation1 [shape = 'u32[144,128]{1,0:T(1,128)}', space=vmem, size = 0x12000, scoped, tag = 'internal scratch']
  %s0 = inlined_call_operand.vmem [shape: bf16[2,64,100], index: 0, kind: input, shape index: {}]
  %s1 = inlined_call_operand.vmem [shape: bf16[100,16], index: 1, kind: input, shape index: {}]
  %s2 = inlined_call_operand.vmem [shape: f32[1,16], index: 2, kind: input, shape index: {}]
  %s3 = inlined_call_operand.vmem [shape: bf16[400,64], index: 3, kind: input, shape index: {}]
  %s4 = inlined_call_operand.vmem [shape: bf16[25,16,128], index: 4, kind: input, shape index: {}]
  %s5 = inlined_call_operand.vmem [shape: f32[1,128], index: 5, kind: input, shape index: {}]
  %s6 = inlined_call_operand.vmem [shape: f32[2,16,128], index: 6, kind: output, shape index: {}]
  %s7 = sld [smem:[#allocation0]]
  $region57: #{lenet_conv_bottom_forward.1} parent=0
    _
  %s9 = ssub.s32 1, %s7
  %s10 = scalar_select 0, %s9, %s7
  loop: start=0, step=1, limit=4
  $region2: #{lenet_conv_bottom_forward.1} parent=0 // loop_pre_header
    _
  $region3: #{lenet_conv_bottom_forward.1} parent=0 // loop_header
    %s12 = sphi 0, %s16
    %p13 = scmp.ge.s32.totalorder %s12, 4
    %s22 = sphi 0, %s24
    %s25 = sphi 0, %s22
    %s26 = sphi 0, %s25
    %s42 = sphi 0, %s26
    %s46 = sphi 0, %s46
    %s48 = sphi 0, %s46
    %s49 = sphi 0, %s48
    %s63 = sphi 0, %s49
    %s67 = sphi 0, %s67
    %s69 = sphi 0, %s67
    %s70 = sphi 0, %s69
    %s84 = sphi 0, %s70
    %s88 = sphi 0, %s88
    %s90 = sphi 0, %s88
    %s91 = sphi 0, %s90
    %s105 = sphi 0, %s91
    %s109 = sphi 0, %s109
    %s111 = sphi 0, %s109
    %s112 = sphi 0, %s111
    %s126 = sphi 0, %s112
    %s130 = sphi 0, %s130
    %s132 = sphi 0, %s130
    %s133 = sphi 0, %s132
    %s147 = sphi 0, %s133
    %s153 = sphi 0, %s155
    %s156 = sphi 0, %s153
    %s157 = sphi 0, %s156
    %s173 = sphi 0, %s157
  $region4: #{lenet_conv_bottom_forward.1} parent=0 // loop_header_branch
    %15 = sbr.rel (%p13) target = $region8
  $region5: #{lenet_conv_bottom_forward.1} parent=0 // loop_body
    %s17 = ssub.s32 %s12, 1
    %s18 = ssub.s32 %s12, 2
    %s19 = sadd.s32 %s12, 1
    %s20 = ssub.s32 %s12, %s19
    %p21 = scmp.eq.s32.totalorder %s20, 0
    %s23 = sadd.s32 %s22, 1
    %s24 = scalar_select %p21, %s22, %s23
    %p27 = pneg %p21
    %p28 = scmp.eq.s32.totalorder %s12, 1
    %p29 = por %p27, %p28
    %p30 = scmp.ne.s32.totalorder %s22, %s25
    %p31 = scmp.eq.s32.totalorder %s12, 0
    %p32 = por %p30, %p31
    %p33 = scmp.ne.s32.totalorder %s22, %s25
    %p34 = scmp.eq.s32.totalorder %s17, 1
    %p35 = por %p33, %p34
    %p36 = scmp.ne.s32.totalorder %s25, %s26
    %p37 = scmp.eq.s32.totalorder %s17, 0
    %p38 = por %p36, %p37
    %p39 = scmp.ne.s32.totalorder %s25, %s26
    %p40 = scmp.eq.s32.totalorder %s18, 1
    %p41 = por %p39, %p40
    %p43 = scmp.ne.s32.totalorder %s26, %s42
    %p44 = scmp.eq.s32.totalorder %s18, 0
    %p45 = por %p43, %p44
    %s47 = sadd.s32 %s46, 1
    %p50 = scmp.eq.s32.totalorder %s12, 1
    %p51 = scmp.ne.s32.totalorder %s46, %s48
    %p52 = scmp.eq.s32.totalorder %s12, 0
    %p53 = por %p51, %p52
    %p54 = scmp.ne.s32.totalorder %s46, %s48
    %p55 = scmp.eq.s32.totalorder %s17, 1
    %p56 = por %p54, %p55
    %p57 = scmp.ne.s32.totalorder %s48, %s49
    %p58 = scmp.eq.s32.totalorder %s17, 0
    %p59 = por %p57, %p58
    %p60 = scmp.ne.s32.totalorder %s48, %s49
    %p61 = scmp.eq.s32.totalorder %s18, 1
    %p62 = por %p60, %p61
    %p64 = scmp.ne.s32.totalorder %s49, %s63
    %p65 = scmp.eq.s32.totalorder %s18, 0
    %p66 = por %p64, %p65
    %s68 = sadd.s32 %s67, 1
    %p71 = scmp.eq.s32.totalorder %s12, 1
    %p72 = scmp.ne.s32.totalorder %s67, %s69
    %p73 = scmp.eq.s32.totalorder %s12, 0
    %p74 = por %p72, %p73
    %p75 = scmp.ne.s32.totalorder %s67, %s69
    %p76 = scmp.eq.s32.totalorder %s17, 1
    %p77 = por %p75, %p76
    %p78 = scmp.ne.s32.totalorder %s69, %s70
    %p79 = scmp.eq.s32.totalorder %s17, 0
    %p80 = por %p78, %p79
    %p81 = scmp.ne.s32.totalorder %s69, %s70
    %p82 = scmp.eq.s32.totalorder %s18, 1
    %p83 = por %p81, %p82
    %p85 = scmp.ne.s32.totalorder %s70, %s84
    %p86 = scmp.eq.s32.totalorder %s18, 0
    %p87 = por %p85, %p86
    %s89 = sadd.s32 %s88, 1
    %p92 = scmp.eq.s32.totalorder %s12, 1
    %p93 = scmp.ne.s32.totalorder %s88, %s90
    %p94 = scmp.eq.s32.totalorder %s12, 0
    %p95 = por %p93, %p94
    %p96 = scmp.ne.s32.totalorder %s88, %s90
    %p97 = scmp.eq.s32.totalorder %s17, 1
    %p98 = por %p96, %p97
    %p99 = scmp.ne.s32.totalorder %s90, %s91
    %p100 = scmp.eq.s32.totalorder %s17, 0
    %p101 = por %p99, %p100
    %p102 = scmp.ne.s32.totalorder %s90, %s91
    %p103 = scmp.eq.s32.totalorder %s18, 1
    %p104 = por %p102, %p103
    %p106 = scmp.ne.s32.totalorder %s91, %s105
    %p107 = scmp.eq.s32.totalorder %s18, 0
    %p108 = por %p106, %p107
    %s110 = sadd.s32 %s109, 1
    %p113 = scmp.eq.s32.totalorder %s12, 1
    %p114 = scmp.ne.s32.totalorder %s109, %s111
    %p115 = scmp.eq.s32.totalorder %s12, 0
    %p116 = por %p114, %p115
    %p117 = scmp.ne.s32.totalorder %s109, %s111
    %p118 = scmp.eq.s32.totalorder %s17, 1
    %p119 = por %p117, %p118
    %p120 = scmp.ne.s32.totalorder %s111, %s112
    %p121 = scmp.eq.s32.totalorder %s17, 0
    %p122 = por %p120, %p121
    %p123 = scmp.ne.s32.totalorder %s111, %s112
    %p124 = scmp.eq.s32.totalorder %s18, 1
    %p125 = por %p123, %p124
    %p127 = scmp.ne.s32.totalorder %s112, %s126
    %p128 = scmp.eq.s32.totalorder %s18, 0
    %p129 = por %p127, %p128
    %s131 = sadd.s32 %s130, 1
    %p134 = scmp.eq.s32.totalorder %s12, 1
    %p135 = scmp.ne.s32.totalorder %s130, %s132
    %p136 = scmp.eq.s32.totalorder %s12, 0
    %p137 = por %p135, %p136
    %p138 = scmp.ne.s32.totalorder %s130, %s132
    %p139 = scmp.eq.s32.totalorder %s17, 1
    %p140 = por %p138, %p139
    %p141 = scmp.ne.s32.totalorder %s132, %s133
    %p142 = scmp.eq.s32.totalorder %s17, 0
    %p143 = por %p141, %p142
    %p144 = scmp.ne.s32.totalorder %s132, %s133
    %p145 = scmp.eq.s32.totalorder %s18, 1
    %p146 = por %p144, %p145
    %p148 = scmp.ne.s32.totalorder %s133, %s147
    %p149 = scmp.eq.s32.totalorder %s18, 0
    %p150 = por %p148, %p149
    %s151 = ssub.s32 %s12, %s19
    %p152 = scmp.eq.s32.totalorder %s151, 0
    %s154 = sadd.s32 %s153, 1
    %s155 = scalar_select %p152, %s153, %s154
    %p158 = pneg %p152
    %p159 = scmp.eq.s32.totalorder %s12, 1
    %p160 = por %p158, %p159
    %p161 = scmp.ne.s32.totalorder %s153, %s156
    %p162 = scmp.eq.s32.totalorder %s12, 0
    %p163 = por %p161, %p162
    %p164 = scmp.ne.s32.totalorder %s153, %s156
    %p165 = scmp.eq.s32.totalorder %s17, 1
    %p166 = por %p164, %p165
    %p167 = scmp.ne.s32.totalorder %s156, %s157
    %p168 = scmp.eq.s32.totalorder %s17, 0
    %p169 = por %p167, %p168
    %p170 = scmp.ne.s32.totalorder %s156, %s157
    %p171 = scmp.eq.s32.totalorder %s18, 1
    %p172 = por %p170, %p171
    %p174 = scmp.ne.s32.totalorder %s157, %s173
    %p175 = scmp.eq.s32.totalorder %s18, 0
    %p176 = por %p174, %p175
    %p177 = scmp.le.s32.totalorder 1, %s12
    %p178 = scmp.lt.s32.totalorder %s12, 3
    %p179 = pnand %p177, %p178
    %p180 = pneg %p179
    // Predicated region
    $region9: #{lenet_conv_bottom_forward.1} parent=5 // pred_check
      _
    $region10: #{lenet_conv_bottom_forward.1} parent=5 // pred_check_branch
      %182 = sbr.rel (%p179) target = $region12
    $region11: #{lenet_conv_bottom_forward.1} parent=5 // pred_region
      %s183 = ssub.s32 %s12, 1
      // Predicated region
      $region13: #{lenet_conv_bottom_forward.1} parent=11 // pred_check
        %p184 = pneg %p59
      $region14: #{lenet_conv_bottom_forward.1} parent=11 // pred_check_branch
        %186 = sbr.rel (%p184) target = $region16
      $region15: #{lenet_conv_bottom_forward.1} parent=11 // pred_region
        _
      $region16: #{lenet_conv_bottom_forward.1} parent=11 // pred_fallthru
        _
      // Predicated region
      $region17: #{lenet_conv_bottom_forward.1} parent=11 // pred_check
        %p187 = pneg %p80
      $region18: #{lenet_conv_bottom_forward.1} parent=11 // pred_check_branch
        %189 = sbr.rel (%p187) target = $region20
      $region19: #{lenet_conv_bottom_forward.1} parent=11 // pred_region
        _
      $region20: #{lenet_conv_bottom_forward.1} parent=11 // pred_fallthru
        _
      // Predicated region
      $region21: #{lenet_conv_bottom_forward.1} parent=11 // pred_check
        %p190 = pneg %p101
      $region22: #{lenet_conv_bottom_forward.1} parent=11 // pred_check_branch
        %192 = sbr.rel (%p190) target = $region24
      $region23: #{lenet_conv_bottom_forward.1} parent=11 // pred_region
        _
      $region24: #{lenet_conv_bottom_forward.1} parent=11 // pred_fallthru
        _
      // Predicated region
      $region25: #{lenet_conv_bottom_forward.1} parent=11 // pred_check
        %p193 = pneg %p122
      $region26: #{lenet_conv_bottom_forward.1} parent=11 // pred_check_branch
        %195 = sbr.rel (%p193) target = $region28
      $region27: #{lenet_conv_bottom_forward.1} parent=11 // pred_region
        _
      $region28: #{lenet_conv_bottom_forward.1} parent=11 // pred_fallthru
        _
      // Predicated region
      $region29: #{lenet_conv_bottom_forward.1} parent=11 // pred_check
        %p196 = pneg %p143
      $region30: #{lenet_conv_bottom_forward.1} parent=11 // pred_check_branch
        %198 = sbr.rel (%p196) target = $region32
      $region31: #{lenet_conv_bottom_forward.1} parent=11 // pred_region
        _
      $region32: #{lenet_conv_bottom_forward.1} parent=11 // pred_fallthru
        _
    $region12: #{lenet_conv_bottom_forward.1} parent=5 // pred_fallthru
      _
    %p199 = scmp.lt.s32.totalorder %s12, 2
    // Predicated region
    $region33: #{lenet_conv_bottom_forward.1} parent=5 // pred_check
      %p200 = pneg %p199
    $region34: #{lenet_conv_bottom_forward.1} parent=5 // pred_check_branch
      %202 = sbr.rel (%p200) target = $region36
    $region35: #{lenet_conv_bottom_forward.1} parent=5 // pred_region
      // Predicated region
      $region37: #{lenet_conv_bottom_forward.1} parent=35 // pred_check
        %p203 = pneg %p32
      $region38: #{lenet_conv_bottom_forward.1} parent=35 // pred_check_branch
        %205 = sbr.rel (%p203) target = $region40
      $region39: #{lenet_conv_bottom_forward.1} parent=35 // pred_region
        %p206 = scmp.lt.s32.totalorder %s12, 1
        %s207 = scalar_select %p206, %s12, 1
        %s208 = smul.addr %s207, 8
        %s209 = smul.addr %s208, 4
        %s210 = scalar_lea.vmem %s0, %s209
      $region40: #{lenet_conv_bottom_forward.1} parent=35 // pred_fallthru
        _
    $region36: #{lenet_conv_bottom_forward.1} parent=5 // pred_fallthru
      _
    %p211 = scmp.le.s32.totalorder 1, %s12
    %p212 = scmp.lt.s32.totalorder %s12, 3
    %p213 = pnand %p211, %p212
    %p214 = pneg %p213
    // Predicated region
    $region41: #{lenet_conv_bottom_forward.1} parent=5 // pred_check
      _
    $region42: #{lenet_conv_bottom_forward.1} parent=5 // pred_check_branch
      %216 = sbr.rel (%p213) target = $region44
    $region43: #{lenet_conv_bottom_forward.1} parent=5 // pred_region
      %s217 = ssub.s32 %s12, 1
      %p218 = scmp.lt.s32.totalorder %s17, 1
      %s219 = scalar_select %p218, %s17, 1
      %s220 = smul.addr %s219, 8
      %s221 = smul.addr %s220, 4
      %s222 = scalar_lea.vmem %s0, %s221
      %p223 = pneg %p38
      %p224 = pneg %p35
      %p225 = pneg %p59
      %p226 = pneg %p56
      %p227 = pneg %p80
      %p228 = pneg %p77
      %p229 = pneg %p101
      %p230 = pneg %p98
      %p231 = pneg %p122
      %p232 = pneg %p119
      %p233 = pneg %p143
      %p234 = pneg %p140
      %p235 = pneg %p169
      %p236 = pneg %p166
      %p237 = scmp.lt.s32.totalorder %s17, 1
      %s238 = scalar_select %p237, %s17, 1
      %s239 = smul.addr %s238, 2
      %s240 = smul.addr %s239, 8
      %s241 = scalar_lea.vmem %s6, %s240
      %p242 = scmp.lt.s32.totalorder %s17, 1
      %s243 = scalar_select %p242, %s17, 1
      %s244 = smul.addr %s243, 8
      %s245 = smul.addr %s244, 4
      %s246 = scalar_lea.vmem %s0, %s245
      %p247 = scmp.lt.s32.totalorder %s17, 1
      %s248 = scalar_select %p247, %s17, 1
      %s249 = smul.addr %s248, 2
      %s250 = smul.addr %s249, 8
      %s251 = scalar_lea.vmem %s6, %s250
      %v253 = vld [vmem:[%s246] sm:$0xf]
      %v254 = vld [vmem:[%s246 + $0x4] sm:$0xf]
      %v255 = vld [vmem:[%s246 + $0x8] sm:$0xf]
      %v256 = vld [vmem:[%s246 + $0xc] sm:$0xf]
      %v257 = vld [vmem:[%s246 + $0x10] sm:$0xf]
      %v258 = vld [vmem:[%s246 + $0x14] sm:$0xf]
      %v259 = vld [vmem:[%s246 + $0x18] sm:$0xf]
      %v260 = vld [vmem:[%s246 + $0x1c] sm:$0xf]
      %v261 = vld [vmem:[%s1] sm:$0xf]
      %v262 = vld [vmem:[%s1 + $0x4] sm:$0xf]
      %v263 = vld [vmem:[%s1 + $0x8] sm:$0xf]
      %v264 = vld [vmem:[%s1 + $0xc] sm:$0xf]
      %v265 = vld [vmem:[%s1 + $0x10] sm:$0xf]
      %v266 = vld [vmem:[%s1 + $0x14] sm:$0xf]
      %v267 = vld [vmem:[%s1 + $0x18] sm:$0xf]
      %v268 = vld [vmem:[%s1 + $0x1c] sm:$0xf]
      %v269 = vld [vmem:[%s1 + $0x20] sm:$0xf]
      %v270 = vld [vmem:[%s1 + $0x24] sm:$0xf]
      %v271 = vld [vmem:[%s1 + $0x28] sm:$0xf]
      %v272 = vld [vmem:[%s1 + $0x2c] sm:$0xf]
      %v273 = vld [vmem:[%s1 + $0x30] sm:$0x3]
      %v274 = vld [vmem:[%s2] sm:$0x1]
      %v276 = vlaneseq
      %v277 = vshrl.u32 %v276, 7
      %v278 = vsub.s32 0, %v277
      %v279 = vrot.slane %v274, %v278
      %v289 = vunpack.c.l.b16 %v253
      %v290 = vunpack.c.l.b16 %v254
      %v291 = vunpack.c.l.b16 %v255
      %v292 = vunpack.c.l.b16 %v256
      %v293 = vunpack.c.l.b16 %v257
      %v294 = vunpack.c.l.b16 %v258
      %v295 = vunpack.c.l.b16 %v259
      %v296 = vunpack.c.l.b16 %v260
      %v297 = vpack.c.b16 %v290, %v289
      %v298 = vpack.c.b16 %v292, %v291
      %v299 = vpack.c.b16 %v294, %v293
      %v300 = vpack.c.b16 %v296, %v295
      %v314 = vunpack.c.l.b16 %v261
      %v315 = vunpack.c.l.b16 %v262
      %v316 = vunpack.c.l.b16 %v263
      %v317 = vunpack.c.l.b16 %v264
      %v318 = vunpack.c.l.b16 %v265
      %v319 = vunpack.c.l.b16 %v266
      %v320 = vunpack.c.l.b16 %v267
      %v321 = vunpack.c.l.b16 %v268
      %v322 = vunpack.c.l.b16 %v269
      %v323 = vunpack.c.l.b16 %v270
      %v324 = vunpack.c.l.b16 %v271
      %v325 = vunpack.c.l.b16 %v272
      %v326 = vunpack.c.l.b16 %v273
      %v327 = vpack.c.b16 %v315, %v314
      %v328 = vpack.c.b16 %v317, %v316
      %v329 = vpack.c.b16 %v319, %v318
      %v330 = vpack.c.b16 %v321, %v320
      %v331 = vpack.c.b16 %v323, %v322
      %v332 = vpack.c.b16 %v325, %v324
      %v333 = vpack.c.b16 %v326, %v326
      %vm340 = vcmask 818176
      %v342 = vsel %vm340, %v297, 0
      %v345 = vsel %vm340, %v298, 0
      %v348 = vsel %vm340, %v299, 0
      %v351 = vsel %vm340, %v300, 0
      %vm353 = vcmask 1041408
      %v355 = vsel %vm353, %v333, 0
      %357 = vmatprep.subr.bf16.mxu0 0
      %358 = vmatpush1.bf16.msra.mxu0 %v327
      %359 = vmatprep.subr.bf16.mxu0 0
      %360 = vmatpush1.bf16.msra.mxu0 %v328
      %361 = vmatprep.subr.bf16.mxu0 0
      %362 = vmatpush1.bf16.msra.mxu0 %v329
      %363 = vmatprep.subr.bf16.mxu0 0
      %364 = vmatpush1.bf16.msra.mxu0 %v330
      %365 = vmatprep.subr.bf16.mxu0 0
      %366 = vmatpush1.bf16.msra.mxu0 %v331
      %367 = vmatprep.subr.bf16.mxu0 0
      %368 = vmatpush1.bf16.msra.mxu0 %v332
      %369 = vmatprep.subr.bf16.mxu0 0
      %370 = vmatpush1.bf16.msra.mxu0 %v355
      %371 = vmatprep.subr.bf16.mxu0 0
      %372 = vmatpush1.bf16.msra.mxu0 0
      %373 = vmatprep.subr.bf16.mxu0 0
      %374 = vmatpush1.bf16.msra.mxu0 0
      %375 = vmatprep.subr.bf16.mxu0 0
      %376 = vmatpush1.bf16.msra.mxu0 0
      %377 = vmatprep.subr.bf16.mxu0 0
      %378 = vmatpush1.bf16.msra.mxu0 0
      %379 = vmatprep.subr.bf16.mxu0 0
      %380 = vmatpush1.bf16.msra.mxu0 0
      %381 = vmatprep.subr.bf16.mxu0 0
      %382 = vmatpush1.bf16.msra.mxu0 0
      %383 = vmatprep.subr.bf16.mxu0 0
      %384 = vmatpush1.bf16.msra.mxu0 0
      %385 = vmatprep.subr.bf16.mxu0 0
      %386 = vmatpush1.bf16.msra.mxu0 0
      %387 = vmatprep.subr.bf16.mxu0 0
      %388 = vmatpush1.bf16.msra.mxu0 0
      %389 = vmatprep.mubr.bf16.mxu0 0
      %390 = vmatmul.mubr.bf16.gmra.mrb[0].mxu0 %v342
      %v391 = vpop.f32.mrb[0].mxu0
      %v392 = vadd.f32 %v279, %v391
      %v393 = vpop.f32.mrb[0].mxu0
      %v394 = vpop.f32.mrb[0].mxu0
      %v395 = vadd.f32 %v279, %v394
      %v396 = vpop.f32.mrb[0].mxu0
      %397 = vmatprep.mubr.bf16.mxu0 0
      %398 = vmatmul.mubr.bf16.gmra.mrb[0].mxu0 %v345
      %v399 = vpop.f32.mrb[0].mxu0
      %v400 = vadd.f32 %v279, %v399
      %v401 = vpop.f32.mrb[0].mxu0
      %v402 = vpop.f32.mrb[0].mxu0
      %v403 = vadd.f32 %v279, %v402
      %v404 = vpop.f32.mrb[0].mxu0
      %405 = vmatprep.mubr.bf16.mxu0 0
      %406 = vmatmul.mubr.bf16.gmra.mrb[0].mxu0 %v348
      %v407 = vpop.f32.mrb[0].mxu0
      %v408 = vadd.f32 %v279, %v407
      %v409 = vpop.f32.mrb[0].mxu0
      %v410 = vpop.f32.mrb[0].mxu0
      %v411 = vadd.f32 %v279, %v410
      %v412 = vpop.f32.mrb[0].mxu0
      %413 = vmatprep.mubr.bf16.mxu0 0
      %414 = vmatmul.mubr.bf16.gmra.mrb[0].mxu0 %v351
      %v415 = vpop.f32.mrb[0].mxu0
      %v416 = vadd.f32 %v279, %v415
      %v417 = vpop.f32.mrb[0].mxu0
      %v418 = vpop.f32.mrb[0].mxu0
      %v419 = vadd.f32 %v279, %v418
      %v420 = vpop.f32.mrb[0].mxu0
      %421 = vdwg.mxu0
      %v422 = vmax.f32 %v392, 0.0
      %v423 = vmax.f32 %v395, 0.0
      %v424 = vmax.f32 %v400, 0.0
      %v425 = vmax.f32 %v403, 0.0
      %v426 = vmax.f32 %v408, 0.0
      %v427 = vmax.f32 %v411, 0.0
      %v428 = vmax.f32 %v416, 0.0
      %v429 = vmax.f32 %v419, 0.0
      %v430 = vpack.c.bf16 %v423, %v422
      %v431 = vpack.c.bf16 %v425, %v424
      %v432 = vpack.c.bf16 %v427, %v426
      %v433 = vpack.c.bf16 %v429, %v428
      %v434 = vld [vmem:[%s3] sm:$0xf]
      %v435 = vld [vmem:[%s3 + $0x4] sm:$0xf]
      %v436 = vld [vmem:[%s3 + $0x8] sm:$0xf]
      %v437 = vld [vmem:[%s3 + $0xc] sm:$0xf]
      %v438 = vld [vmem:[%s3 + $0x10] sm:$0xf]
      %v439 = vld [vmem:[%s3 + $0x14] sm:$0xf]
      %v440 = vld [vmem:[%s3 + $0x18] sm:$0xf]
      %v441 = vld [vmem:[%s3 + $0x1c] sm:$0xf]
      %v442 = vld [vmem:[%s3 + $0x20] sm:$0xf]
      %v443 = vld [vmem:[%s3 + $0x24] sm:$0xf]
      %v444 = vld [vmem:[%s3 + $0x28] sm:$0xf]
      %v445 = vld [vmem:[%s3 + $0x2c] sm:$0xf]
      %v446 = vld [vmem:[%s3 + $0x30] sm:$0xf]
      %v447 = vld [vmem:[%s3 + $0x34] sm:$0xf]
      %v448 = vld [vmem:[%s3 + $0x38] sm:$0xf]
      %v449 = vld [vmem:[%s3 + $0x3c] sm:$0xf]
      %v450 = vld [vmem:[%s3 + $0x40] sm:$0xf]
      %v451 = vld [vmem:[%s3 + $0x44] sm:$0xf]
      %v452 = vld [vmem:[%s3 + $0x48] sm:$0xf]
      %v453 = vld [vmem:[%s3 + $0x4c] sm:$0xf]
      %v454 = vld [vmem:[%s3 + $0x50] sm:$0xf]
      %v455 = vld [vmem:[%s3 + $0x54] sm:$0xf]
      %v456 = vld [vmem:[%s3 + $0x58] sm:$0xf]
      %v457 = vld [vmem:[%s3 + $0x5c] sm:$0xf]
      %v458 = vld [vmem:[%s3 + $0x60] sm:$0xf]
      %v459 = vld [vmem:[%s3 + $0x64] sm:$0xf]
      %v460 = vld [vmem:[%s3 + $0x68] sm:$0xf]
      %v461 = vld [vmem:[%s3 + $0x6c] sm:$0xf]
      %v462 = vld [vmem:[%s3 + $0x70] sm:$0xf]
      %v463 = vld [vmem:[%s3 + $0x74] sm:$0xf]
      %v464 = vld [vmem:[%s3 + $0x78] sm:$0xf]
      %v465 = vld [vmem:[%s3 + $0x7c] sm:$0xf]
      %v466 = vld [vmem:[%s3 + $0x80] sm:$0xf]
      %v467 = vld [vmem:[%s3 + $0x84] sm:$0xf]
      %v468 = vld [vmem:[%s3 + $0x88] sm:$0xf]
      %v469 = vld [vmem:[%s3 + $0x8c] sm:$0xf]
      %v470 = vld [vmem:[%s3 + $0x90] sm:$0xf]
      %v471 = vld [vmem:[%s3 + $0x94] sm:$0xf]
      %v472 = vld [vmem:[%s3 + $0x98] sm:$0xf]
      %v473 = vld [vmem:[%s3 + $0x9c] sm:$0xf]
      %v474 = vld [vmem:[%s3 + $0xa0] sm:$0xf]
      %v475 = vld [vmem:[%s3 + $0xa4] sm:$0xf]
      %v476 = vld [vmem:[%s3 + $0xa8] sm:$0xf]
      %v477 = vld [vmem:[%s3 + $0xac] sm:$0xf]
      %v478 = vld [vmem:[%s3 + $0xb0] sm:$0xf]
      %v479 = vld [vmem:[%s3 + $0xb4] sm:$0xf]
      %v480 = vld [vmem:[%s3 + $0xb8] sm:$0xf]
      %v481 = vld [vmem:[%s3 + $0xbc] sm:$0xf]
      %v482 = vld [vmem:[%s3 + $0xc0] sm:$0xf]
      %v483 = vld [vmem:[%s3 + $0xc4] sm:$0xf]
      %v534 = vunpack.c.l.b16 %v434
      %v535 = vunpack.c.l.b16 %v435
      %v536 = vunpack.c.l.b16 %v436
      %v537 = vunpack.c.l.b16 %v437
      %v538 = vunpack.c.l.b16 %v438
      %v539 = vunpack.c.l.b16 %v439
      %v540 = vunpack.c.l.b16 %v440
      %v541 = vunpack.c.l.b16 %v441
      %v542 = vunpack.c.l.b16 %v442
      %v543 = vunpack.c.l.b16 %v443
      %v544 = vunpack.c.l.b16 %v444
      %v545 = vunpack.c.l.b16 %v445
      %v546 = vunpack.c.l.b16 %v446
      %v547 = vunpack.c.l.b16 %v447
      %v548 = vunpack.c.l.b16 %v448
      %v549 = vunpack.c.l.b16 %v449
      %v550 = vunpack.c.l.b16 %v450
      %v551 = vunpack.c.l.b16 %v451
      %v552 = vunpack.c.l.b16 %v452
      %v553 = vunpack.c.l.b16 %v453
      %v554 = vunpack.c.l.b16 %v454
      %v555 = vunpack.c.l.b16 %v455
      %v556 = vunpack.c.l.b16 %v456
      %v557 = vunpack.c.l.b16 %v457
      %v558 = vunpack.c.l.b16 %v458
      %v559 = vunpack.c.l.b16 %v459
      %v560 = vunpack.c.l.b16 %v460
      %v561 = vunpack.c.l.b16 %v461
      %v562 = vunpack.c.l.b16 %v462
      %v563 = vunpack.c.l.b16 %v463
      %v564 = vunpack.c.l.b16 %v464
      %v565 = vunpack.c.l.b16 %v465
      %v566 = vunpack.c.l.b16 %v466
      %v567 = vunpack.c.l.b16 %v467
      %v568 = vunpack.c.l.b16 %v468
      %v569 = vunpack.c.l.b16 %v469
      %v570 = vunpack.c.l.b16 %v470
      %v571 = vunpack.c.l.b16 %v471
      %v572 = vunpack.c.l.b16 %v472
      %v573 = vunpack.c.l.b16 %v473
      %v574 = vunpack.c.l.b16 %v474
      %v575 = vunpack.c.l.b16 %v475
      %v576 = vunpack.c.l.b16 %v476
      %v577 = vunpack.c.l.b16 %v477
      %v578 = vunpack.c.l.b16 %v478
      %v579 = vunpack.c.l.b16 %v479
      %v580 = vunpack.c.l.b16 %v480
      %v581 = vunpack.c.l.b16 %v481
      %v582 = vunpack.c.l.b16 %v482
      %v583 = vunpack.c.l.b16 %v483
      %v584 = vpack.c.b16 %v535, %v534
      %v585 = vpack.c.b16 %v537, %v536
      %v586 = vpack.c.b16 %v539, %v538
      %v587 = vpack.c.b16 %v541, %v540
      %v588 = vpack.c.b16 %v543, %v542
      %v589 = vpack.c.b16 %v545, %v544
      %v590 = vpack.c.b16 %v547, %v546
      %v591 = vpack.c.b16 %v549, %v548
      %v592 = vpack.c.b16 %v551, %v550
      %v593 = vpack.c.b16 %v553, %v552
      %v594 = vpack.c.b16 %v555, %v554
      %v595 = vpack.c.b16 %v557, %v556
      %v596 = vpack.c.b16 %v559, %v558
      %v597 = vpack.c.b16 %v561, %v560
      %v598 = vpack.c.b16 %v563, %v562
      %v599 = vpack.c.b16 %v565, %v564
      %v600 = vpack.c.b16 %v567, %v566
      %v601 = vpack.c.b16 %v569, %v568
      %v602 = vpack.c.b16 %v571, %v570
      %v603 = vpack.c.b16 %v573, %v572
      %v604 = vpack.c.b16 %v575, %v574
      %v605 = vpack.c.b16 %v577, %v576
      %v606 = vpack.c.b16 %v579, %v578
      %v607 = vpack.c.b16 %v581, %v580
      %v608 = vpack.c.b16 %v583, %v582
      %vm609 = vcmask 523264
      %v611 = vsel %vm609, %v584, 0
      %v614 = vsel %vm609, %v585, 0
      %v617 = vsel %vm609, %v586, 0
      %v620 = vsel %vm609, %v587, 0
      %v623 = vsel %vm609, %v588, 0
      %v626 = vsel %vm609, %v589, 0
      %v629 = vsel %vm609, %v590, 0
      %v632 = vsel %vm609, %v591, 0
      %v635 = vsel %vm609, %v592, 0
      %v638 = vsel %vm609, %v593, 0
      %v641 = vsel %vm609, %v594, 0
      %v644 = vsel %vm609, %v595, 0
      %v647 = vsel %vm609, %v596, 0
      %v650 = vsel %vm609, %v597, 0
      %v653 = vsel %vm609, %v598, 0
      %v656 = vsel %vm609, %v599, 0
      %v659 = vsel %vm609, %v600, 0
      %v662 = vsel %vm609, %v601, 0
      %v665 = vsel %vm609, %v602, 0
      %v668 = vsel %vm609, %v603, 0
      %v671 = vsel %vm609, %v604, 0
      %v674 = vsel %vm609, %v605, 0
      %v677 = vsel %vm609, %v606, 0
      %v680 = vsel %vm609, %v607, 0
      %v683 = vsel %vm609, %v608, 0
      %685 = vmatprep.subr.bf16.mxu0 0
      %686 = vmatpush1.bf16.msra.mxu0 %v430
      %687 = vmatprep.subr.bf16.mxu0 0
      %688 = vmatpush1.bf16.msra.mxu0 %v431
      %689 = vmatprep.subr.bf16.mxu0 0
      %690 = vmatpush1.bf16.msra.mxu0 %v432
      %691 = vmatprep.subr.bf16.mxu0 0
      %692 = vmatpush1.bf16.msra.mxu0 %v433
      %693 = vmatprep.subr.bf16.mxu0 0
      %694 = vmatpush1.bf16.msra.mxu0 0
      %695 = vmatprep.subr.bf16.mxu0 0
      %696 = vmatpush1.bf16.msra.mxu0 0
      %697 = vmatprep.subr.bf16.mxu0 0
      %698 = vmatpush1.bf16.msra.mxu0 0
      %699 = vmatprep.subr.bf16.mxu0 0
      %700 = vmatpush1.bf16.msra.mxu0 0
      %701 = vmatprep.subr.bf16.mxu0 0
      %702 = vmatpush1.bf16.msra.mxu0 0
      %703 = vmatprep.subr.bf16.mxu0 0
      %704 = vmatpush1.bf16.msra.mxu0 0
      %705 = vmatprep.subr.bf16.mxu0 0
      %706 = vmatpush1.bf16.msra.mxu0 0
      %707 = vmatprep.subr.bf16.mxu0 0
      %708 = vmatpush1.bf16.msra.mxu0 0
      %709 = vmatprep.subr.bf16.mxu0 0
      %710 = vmatpush1.bf16.msra.mxu0 0
      %711 = vmatprep.subr.bf16.mxu0 0
      %712 = vmatpush1.bf16.msra.mxu0 0
      %713 = vmatprep.subr.bf16.mxu0 0
      %714 = vmatpush1.bf16.msra.mxu0 0
      %715 = vmatprep.subr.bf16.mxu0 0
      %716 = vmatpush1.bf16.msra.mxu0 0
      %717 = vmatprep.mubr.bf16.mxu0 0
      %718 = vmatmul.mubr.bf16.gmra.mrb[0].mxu0 %v611
      %v719 = vpop.f32.mrb[0].mxu0
      %v720 = vadd.f32 0.0, %v719
      %v721 = vpop.f32.mrb[0].mxu0
      %v722 = vpop.f32.mrb[0].mxu0
      %v723 = vadd.f32 0.0, %v722
      %v724 = vpop.f32.mrb[0].mxu0
      %725 = vmatprep.mubr.bf16.mxu0 0
      %726 = vmatmul.mubr.bf16.gmra.mrb[0].mxu0 %v614
      %v727 = vpop.f32.mrb[0].mxu0
      %v728 = vadd.f32 0.0, %v727
      %v729 = vpop.f32.mrb[0].mxu0
      %v730 = vpop.f32.mrb[0].mxu0
      %v731 = vadd.f32 0.0, %v730
      %v732 = vpop.f32.mrb[0].mxu0
      %733 = vmatprep.mubr.bf16.mxu0 0
      %734 = vmatmul.mubr.bf16.gmra.mrb[0].mxu0 %v617
      %v735 = vpop.f32.mrb[0].mxu0
      %v736 = vadd.f32 0.0, %v735
      %v737 = vpop.f32.mrb[0].mxu0
      %v738 = vpop.f32.mrb[0].mxu0
      %v739 = vadd.f32 0.0, %v738
      %v740 = vpop.f32.mrb[0].mxu0
      %741 = vmatprep.mubr.bf16.mxu0 0
      %742 = vmatmul.mubr.bf16.gmra.mrb[0].mxu0 %v620
      %v743 = vpop.f32.mrb[0].mxu0
      %v744 = vadd.f32 0.0, %v743
      %v745 = vpop.f32.mrb[0].mxu0
      %v746 = vpop.f32.mrb[0].mxu0
      %v747 = vadd.f32 0.0, %v746
      %v748 = vpop.f32.mrb[0].mxu0
      %749 = vmatprep.mubr.bf16.mxu0 0
      %750 = vmatmul.mubr.bf16.gmra.mrb[0].mxu0 %v623
      %v751 = vpop.f32.mrb[0].mxu0
      %v752 = vadd.f32 0.0, %v751
      %v753 = vpop.f32.mrb[0].mxu0
      %v754 = vpop.f32.mrb[0].mxu0
      %v755 = vadd.f32 0.0, %v754
      %v756 = vpop.f32.mrb[0].mxu0
      %757 = vmatprep.mubr.bf16.mxu0 0
      %758 = vmatmul.mubr.bf16.gmra.mrb[0].mxu0 %v626
      %v759 = vpop.f32.mrb[0].mxu0
      %v760 = vadd.f32 0.0, %v759
      %v761 = vpop.f32.mrb[0].mxu0
      %v762 = vpop.f32.mrb[0].mxu0
      %v763 = vadd.f32 0.0, %v762
      %v764 = vpop.f32.mrb[0].mxu0
      %765 = vmatprep.mubr.bf16.mxu0 0
      %766 = vmatmul.mubr.bf16.gmra.mrb[0].mxu0 %v629
      %v767 = vpop.f32.mrb[0].mxu0
      %v768 = vadd.f32 0.0, %v767
      %v769 = vpop.f32.mrb[0].mxu0
      %v770 = vpop.f32.mrb[0].mxu0
      %v771 = vadd.f32 0.0, %v770
      %v772 = vpop.f32.mrb[0].mxu0
      %773 = vmatprep.mubr.bf16.mxu0 0
      %774 = vmatmul.mubr.bf16.gmra.mrb[0].mxu0 %v632
      %v775 = vpop.f32.mrb[0].mxu0
      %v776 = vadd.f32 0.0, %v775
      %v777 = vpop.f32.mrb[0].mxu0
      %v778 = vpop.f32.mrb[0].mxu0
      %v779 = vadd.f32 0.0, %v778
      %v780 = vpop.f32.mrb[0].mxu0
      %781 = vmatprep.mubr.bf16.mxu0 0
      %782 = vmatmul.mubr.bf16.gmra.mrb[0].mxu0 %v635
      %v783 = vpop.f32.mrb[0].mxu0
      %v784 = vadd.f32 0.0, %v783
      %v785 = vpop.f32.mrb[0].mxu0
      %v786 = vpop.f32.mrb[0].mxu0
      %v787 = vadd.f32 0.0, %v786
      %v788 = vpop.f32.mrb[0].mxu0
      %789 = vmatprep.mubr.bf16.mxu0 0
      %790 = vmatmul.mubr.bf16.gmra.mrb[0].mxu0 %v638
      %v791 = vpop.f32.mrb[0].mxu0
      %v792 = vadd.f32 0.0, %v791
      %v793 = vpop.f32.mrb[0].mxu0
      %v794 = vpop.f32.mrb[0].mxu0
      %v795 = vadd.f32 0.0, %v794
      %v796 = vpop.f32.mrb[0].mxu0
      %797 = vmatprep.mubr.bf16.mxu0 0
      %798 = vmatmul.mubr.bf16.gmra.mrb[0].mxu0 %v641
      %v799 = vpop.f32.mrb[0].mxu0
      %v800 = vadd.f32 0.0, %v799
      %v801 = vpop.f32.mrb[0].mxu0
      %v802 = vpop.f32.mrb[0].mxu0
      %v803 = vadd.f32 0.0, %v802
      %v804 = vpop.f32.mrb[0].mxu0
      %805 = vmatprep.mubr.bf16.mxu0 0
      %806 = vmatmul.mubr.bf16.gmra.mrb[0].mxu0 %v644
      %v807 = vpop.f32.mrb[0].mxu0
      %v808 = vadd.f32 0.0, %v807
      %v809 = vpop.f32.mrb[0].mxu0
      %v810 = vpop.f32.mrb[0].mxu0
      %v811 = vadd.f32 0.0, %v810
      %v812 = vpop.f32.mrb[0].mxu0
      %813 = vmatprep.mubr.bf16.mxu0 0
      %814 = vmatmul.mubr.bf16.gmra.mrb[0].mxu0 %v647
      %v815 = vpop.f32.mrb[0].mxu0
      %v816 = vadd.f32 0.0, %v815
      %v817 = vpop.f32.mrb[0].mxu0
      %v818 = vpop.f32.mrb[0].mxu0
      %v819 = vadd.f32 0.0, %v818
      %v820 = vpop.f32.mrb[0].mxu0
      %821 = vmatprep.mubr.bf16.mxu0 0
      %822 = vmatmul.mubr.bf16.gmra.mrb[0].mxu0 %v650
      %v823 = vpop.f32.mrb[0].mxu0
      %v824 = vadd.f32 0.0, %v823
      %v825 = vpop.f32.mrb[0].mxu0
      %v826 = vpop.f32.mrb[0].mxu0
      %v827 = vadd.f32 0.0, %v826
      %v828 = vpop.f32.mrb[0].mxu0
      %829 = vmatprep.mubr.bf16.mxu0 0
      %830 = vmatmul.mubr.bf16.gmra.mrb[0].mxu0 %v653
      %v831 = vpop.f32.mrb[0].mxu0
      %v832 = vadd.f32 0.0, %v831
      %v833 = vpop.f32.mrb[0].mxu0
      %v834 = vpop.f32.mrb[0].mxu0
      %v835 = vadd.f32 0.0, %v834
      %v836 = vpop.f32.mrb[0].mxu0
      %837 = vmatprep.mubr.bf16.mxu0 0
      %838 = vmatmul.mubr.bf16.gmra.mrb[0].mxu0 %v656
      %v839 = vpop.f32.mrb[0].mxu0
      %v840 = vadd.f32 0.0, %v839
      %v841 = vpop.f32.mrb[0].mxu0
      %v842 = vpop.f32.mrb[0].mxu0
      %v843 = vadd.f32 0.0, %v842
      %v844 = vpop.f32.mrb[0].mxu0
      %845 = vmatprep.mubr.bf16.mxu0 0
      %846 = vmatmul.mubr.bf16.gmra.mrb[0].mxu0 %v659
      %v847 = vpop.f32.mrb[0].mxu0
      %v848 = vadd.f32 0.0, %v847
      %v849 = vpop.f32.mrb[0].mxu0
      %v850 = vpop.f32.mrb[0].mxu0
      %v851 = vadd.f32 0.0, %v850
      %v852 = vpop.f32.mrb[0].mxu0
      %853 = vmatprep.mubr.bf16.mxu0 0
      %854 = vmatmul.mubr.bf16.gmra.mrb[0].mxu0 %v662
      %v855 = vpop.f32.mrb[0].mxu0
      %v856 = vadd.f32 0.0, %v855
      %v857 = vpop.f32.mrb[0].mxu0
      %v858 = vpop.f32.mrb[0].mxu0
      %v859 = vadd.f32 0.0, %v858
      %v860 = vpop.f32.mrb[0].mxu0
      %861 = vmatprep.mubr.bf16.mxu0 0
      %862 = vmatmul.mubr.bf16.gmra.mrb[0].mxu0 %v665
      %v863 = vpop.f32.mrb[0].mxu0
      %v864 = vadd.f32 0.0, %v863
      %v865 = vpop.f32.mrb[0].mxu0
      %v866 = vpop.f32.mrb[0].mxu0
      %v867 = vadd.f32 0.0, %v866
      %v868 = vpop.f32.mrb[0].mxu0
      %869 = vmatprep.mubr.bf16.mxu0 0
      %870 = vmatmul.mubr.bf16.gmra.mrb[0].mxu0 %v668
      %v871 = vpop.f32.mrb[0].mxu0
      %v872 = vadd.f32 0.0, %v871
      %v873 = vpop.f32.mrb[0].mxu0
      %v874 = vpop.f32.mrb[0].mxu0
      %v875 = vadd.f32 0.0, %v874
      %v876 = vpop.f32.mrb[0].mxu0
      %877 = vmatprep.mubr.bf16.mxu0 0
      %878 = vmatmul.mubr.bf16.gmra.mrb[0].mxu0 %v671
      %v879 = vpop.f32.mrb[0].mxu0
      %v880 = vadd.f32 0.0, %v879
      %v881 = vpop.f32.mrb[0].mxu0
      %v882 = vpop.f32.mrb[0].mxu0
      %v883 = vadd.f32 0.0, %v882
      %v884 = vpop.f32.mrb[0].mxu0
      %885 = vmatprep.mubr.bf16.mxu0 0
      %886 = vmatmul.mubr.bf16.gmra.mrb[0].mxu0 %v674
      %v887 = vpop.f32.mrb[0].mxu0
      %v888 = vadd.f32 0.0, %v887
      %v889 = vpop.f32.mrb[0].mxu0
      %v890 = vpop.f32.mrb[0].mxu0
      %v891 = vadd.f32 0.0, %v890
      %v892 = vpop.f32.mrb[0].mxu0
      %893 = vmatprep.mubr.bf16.mxu0 0
      %894 = vmatmul.mubr.bf16.gmra.mrb[0].mxu0 %v677
      %v895 = vpop.f32.mrb[0].mxu0
      %v896 = vadd.f32 0.0, %v895
      %v897 = vpop.f32.mrb[0].mxu0
      %v898 = vpop.f32.mrb[0].mxu0
      %v899 = vadd.f32 0.0, %v898
      %v900 = vpop.f32.mrb[0].mxu0
      %901 = vmatprep.mubr.bf16.mxu0 0
      %902 = vmatmul.mubr.bf16.gmra.mrb[0].mxu0 %v680
      %v903 = vpop.f32.mrb[0].mxu0
      %v904 = vadd.f32 0.0, %v903
      %v905 = vpop.f32.mrb[0].mxu0
      %v906 = vpop.f32.mrb[0].mxu0
      %v907 = vadd.f32 0.0, %v906
      %v908 = vpop.f32.mrb[0].mxu0
      %909 = vmatprep.mubr.bf16.mxu0 0
      %910 = vmatmul.mubr.bf16.gmra.mrb[0].mxu0 %v683
      %v911 = vpop.f32.mrb[0].mxu0
      %v912 = vadd.f32 0.0, %v911
      %v913 = vpop.f32.mrb[0].mxu0
      %v914 = vpop.f32.mrb[0].mxu0
      %v915 = vadd.f32 0.0, %v914
      %v916 = vpop.f32.mrb[0].mxu0
      %917 = vdwg.mxu0
      %v918 = vpack.c.bf16 %v723, %v720
      %v919 = vpack.c.bf16 %v731, %v728
      %v920 = vpack.c.bf16 %v739, %v736
      %v921 = vpack.c.bf16 %v747, %v744
      %v922 = vpack.c.bf16 %v755, %v752
      %v923 = vpack.c.bf16 %v763, %v760
      %v924 = vpack.c.bf16 %v771, %v768
      %v925 = vpack.c.bf16 %v779, %v776
      %v926 = vpack.c.bf16 %v787, %v784
      %v927 = vpack.c.bf16 %v795, %v792
      %v928 = vpack.c.bf16 %v803, %v800
      %v929 = vpack.c.bf16 %v811, %v808
      %v930 = vpack.c.bf16 %v819, %v816
      %v931 = vpack.c.bf16 %v827, %v824
      %v932 = vpack.c.bf16 %v835, %v832
      %v933 = vpack.c.bf16 %v843, %v840
      %v934 = vpack.c.bf16 %v851, %v848
      %v935 = vpack.c.bf16 %v859, %v856
      %v936 = vpack.c.bf16 %v867, %v864
      %v937 = vpack.c.bf16 %v875, %v872
      %v938 = vpack.c.bf16 %v883, %v880
      %v939 = vpack.c.bf16 %v891, %v888
      %v940 = vpack.c.bf16 %v899, %v896
      %v941 = vpack.c.bf16 %v907, %v904
      %v942 = vpack.c.bf16 %v915, %v912
      %v943 = vld [vmem:[%s4] sm:$0xf]
      %v944 = vld [vmem:[%s4 + $0x4] sm:$0xf]
      %s945 = scalar_lea.vmem %s4, 8
      %v946 = vld [vmem:[%s945] sm:$0xf]
      %v947 = vld [vmem:[%s945 + $0x4] sm:$0xf]
      %v950 = vunpack.c.l.b16 %v946
      %v951 = vunpack.c.l.b16 %v947
      %v952 = vpack.c.b16 %v951, %v950
      %vm954 = vcmask 130048
      %v956 = vsel %vm954, %v919, 0
      %958 = vmatprep.subr.bf16.mxu0 0
      %959 = vmatpush1.bf16.msra.mxu0 %v952
      %960 = vmatprep.subr.bf16.mxu0 0
      %961 = vmatpush1.bf16.msra.mxu0 0
      %962 = vmatprep.subr.bf16.mxu0 0
      %963 = vmatpush1.bf16.msra.mxu0 0
      %964 = vmatprep.subr.bf16.mxu0 0
      %965 = vmatpush1.bf16.msra.mxu0 0
      %966 = vmatprep.subr.bf16.mxu0 0
      %967 = vmatpush1.bf16.msra.mxu0 0
      %968 = vmatprep.subr.bf16.mxu0 0
      %969 = vmatpush1.bf16.msra.mxu0 0
      %970 = vmatprep.subr.bf16.mxu0 0
      %971 = vmatpush1.bf16.msra.mxu0 0
      %972 = vmatprep.subr.bf16.mxu0 0
      %973 = vmatpush1.bf16.msra.mxu0 0
      %974 = vmatprep.subr.bf16.mxu0 0
      %975 = vmatpush1.bf16.msra.mxu0 0
      %976 = vmatprep.subr.bf16.mxu0 0
      %977 = vmatpush1.bf16.msra.mxu0 0
      %978 = vmatprep.subr.bf16.mxu0 0
      %979 = vmatpush1.bf16.msra.mxu0 0
      %980 = vmatprep.subr.bf16.mxu0 0
      %981 = vmatpush1.bf16.msra.mxu0 0
      %982 = vmatprep.subr.bf16.mxu0 0
      %983 = vmatpush1.bf16.msra.mxu0 0
      %984 = vmatprep.subr.bf16.mxu0 0
      %985 = vmatpush1.bf16.msra.mxu0 0
      %986 = vmatprep.subr.bf16.mxu0 0
      %987 = vmatpush1.bf16.msra.mxu0 0
      %988 = vmatprep.subr.bf16.mxu0 0
      %989 = vmatpush1.bf16.msra.mxu0 0
      %990 = vmatprep.mubr.bf16.mxu0 0
      %991 = vmatmul.mubr.bf16.gmra.mrb[0].mxu0 %v956
      %v992 = vpop.f32.mrb[0].mxu0
      %v993 = vadd.f32 0.0, %v992
      %v994 = vpop.f32.mrb[0].mxu0
      %v995 = vpop.f32.mrb[0].mxu0
      %v996 = vadd.f32 0.0, %v995
      %v997 = vpop.f32.mrb[0].mxu0
      %998 = vdwg.mxu0
      %v1001 = vunpack.c.l.b16 %v943
      %v1002 = vunpack.c.l.b16 %v944
      %v1003 = vpack.c.b16 %v1002, %v1001
      %v1006 = vsel %vm954, %v918, 0
      %1008 = vmatprep.subr.bf16.mxu0 0
      %1009 = vmatpush1.bf16.msra.mxu0 %v1003
      %1010 = vmatprep.subr.bf16.mxu0 0
      %1011 = vmatpush1.bf16.msra.mxu0 0
      %1012 = vmatprep.subr.bf16.mxu0 0
      %1013 = vmatpush1.bf16.msra.mxu0 0
      %1014 = vmatprep.subr.bf16.mxu0 0
      %1015 = vmatpush1.bf16.msra.mxu0 0
      %1016 = vmatprep.subr.bf16.mxu0 0
      %1017 = vmatpush1.bf16.msra.mxu0 0
      %1018 = vmatprep.subr.bf16.mxu0 0
      %1019 = vmatpush1.bf16.msra.mxu0 0
      %1020 = vmatprep.subr.bf16.mxu0 0
      %1021 = vmatpush1.bf16.msra.mxu0 0
      %1022 = vmatprep.subr.bf16.mxu0 0
      %1023 = vmatpush1.bf16.msra.mxu0 0
      %1024 = vmatprep.subr.bf16.mxu0 0
      %1025 = vmatpush1.bf16.msra.mxu0 0
      %1026 = vmatprep.subr.bf16.mxu0 0
      %1027 = vmatpush1.bf16.msra.mxu0 0
      %1028 = vmatprep.subr.bf16.mxu0 0
      %1029 = vmatpush1.bf16.msra.mxu0 0
      %1030 = vmatprep.subr.bf16.mxu0 0
      %1031 = vmatpush1.bf16.msra.mxu0 0
      %1032 = vmatprep.subr.bf16.mxu0 0
      %1033 = vmatpush1.bf16.msra.mxu0 0
      %1034 = vmatprep.subr.bf16.mxu0 0
      %1035 = vmatpush1.bf16.msra.mxu0 0
      %1036 = vmatprep.subr.bf16.mxu0 0
      %1037 = vmatpush1.bf16.msra.mxu0 0
      %1038 = vmatprep.subr.bf16.mxu0 0
      %1039 = vmatpush1.bf16.msra.mxu0 0
      %1040 = vmatprep.mubr.bf16.mxu0 0
      %1041 = vmatmul.mubr.bf16.gmra.mrb[0].mxu0 %v1006
      %v1042 = vpop.f32.mrb[0].mxu0
      %v1043 = vadd.f32 %v993, %v1042
      %v1044 = vpop.f32.mrb[0].mxu0
      %v1045 = vpop.f32.mrb[0].mxu0
      %v1046 = vadd.f32 %v996, %v1045
      %v1047 = vpop.f32.mrb[0].mxu0
      %1048 = vdwg.mxu0
      %s1049 = scalar_lea.vmem %s4, 16
      %v1050 = vld [vmem:[%s1049] sm:$0xf]
      %v1051 = vld [vmem:[%s1049 + $0x4] sm:$0xf]
      %v1054 = vunpack.c.l.b16 %v1050
      %v1055 = vunpack.c.l.b16 %v1051
      %v1056 = vpack.c.b16 %v1055, %v1054
      %v1059 = vsel %vm954, %v920, 0
      %1061 = vmatprep.subr.bf16.mxu0 0
      %1062 = vmatpush1.bf16.msra.mxu0 %v1056
      %1063 = vmatprep.subr.bf16.mxu0 0
      %1064 = vmatpush1.bf16.msra.mxu0 0
      %1065 = vmatprep.subr.bf16.mxu0 0
      %1066 = vmatpush1.bf16.msra.mxu0 0
      %1067 = vmatprep.subr.bf16.mxu0 0
      %1068 = vmatpush1.bf16.msra.mxu0 0
      %1069 = vmatprep.subr.bf16.mxu0 0
      %1070 = vmatpush1.bf16.msra.mxu0 0
      %1071 = vmatprep.subr.bf16.mxu0 0
      %1072 = vmatpush1.bf16.msra.mxu0 0
      %1073 = vmatprep.subr.bf16.mxu0 0
      %1074 = vmatpush1.bf16.msra.mxu0 0
      %1075 = vmatprep.subr.bf16.mxu0 0
      %1076 = vmatpush1.bf16.msra.mxu0 0
      %1077 = vmatprep.subr.bf16.mxu0 0
      %1078 = vmatpush1.bf16.msra.mxu0 0
      %1079 = vmatprep.subr.bf16.mxu0 0
      %1080 = vmatpush1.bf16.msra.mxu0 0
      %1081 = vmatprep.subr.bf16.mxu0 0
      %1082 = vmatpush1.bf16.msra.mxu0 0
      %1083 = vmatprep.subr.bf16.mxu0 0
      %1084 = vmatpush1.bf16.msra.mxu0 0
      %1085 = vmatprep.subr.bf16.mxu0 0
      %1086 = vmatpush1.bf16.msra.mxu0 0
      %1087 = vmatprep.subr.bf16.mxu0 0
      %1088 = vmatpush1.bf16.msra.mxu0 0
      %1089 = vmatprep.subr.bf16.mxu0 0
      %1090 = vmatpush1.bf16.msra.mxu0 0
      %1091 = vmatprep.subr.bf16.mxu0 0
      %1092 = vmatpush1.bf16.msra.mxu0 0
      %1093 = vmatprep.mubr.bf16.mxu0 0
      %1094 = vmatmul.mubr.bf16.gmra.mrb[0].mxu0 %v1059
      %v1095 = vpop.f32.mrb[0].mxu0
      %v1096 = vadd.f32 0.0, %v1095
      %v1097 = vpop.f32.mrb[0].mxu0
      %v1098 = vpop.f32.mrb[0].mxu0
      %v1099 = vadd.f32 0.0, %v1098
      %v1100 = vpop.f32.mrb[0].mxu0
      %1101 = vdwg.mxu0
      %v1102 = vadd.f32 %v1043, %v1096
      %v1103 = vadd.f32 %v1046, %v1099
      %s1104 = scalar_lea.vmem %s4, 24
      %v1105 = vld [vmem:[%s1104] sm:$0xf]
      %v1106 = vld [vmem:[%s1104 + $0x4] sm:$0xf]
      %v1109 = vunpack.c.l.b16 %v1105
      %v1110 = vunpack.c.l.b16 %v1106
      %v1111 = vpack.c.b16 %v1110, %v1109
      %v1114 = vsel %vm954, %v921, 0
      %1116 = vmatprep.subr.bf16.mxu0 0
      %1117 = vmatpush1.bf16.msra.mxu0 %v1111
      %1118 = vmatprep.subr.bf16.mxu0 0
      %1119 = vmatpush1.bf16.msra.mxu0 0
      %1120 = vmatprep.subr.bf16.mxu0 0
      %1121 = vmatpush1.bf16.msra.mxu0 0
      %1122 = vmatprep.subr.bf16.mxu0 0
      %1123 = vmatpush1.bf16.msra.mxu0 0
      %1124 = vmatprep.subr.bf16.mxu0 0
      %1125 = vmatpush1.bf16.msra.mxu0 0
      %1126 = vmatprep.subr.bf16.mxu0 0
      %1127 = vmatpush1.bf16.msra.mxu0 0
      %1128 = vmatprep.subr.bf16.mxu0 0
      %1129 = vmatpush1.bf16.msra.mxu0 0
      %1130 = vmatprep.subr.bf16.mxu0 0
      %1131 = vmatpush1.bf16.msra.mxu0 0
      %1132 = vmatprep.subr.bf16.mxu0 0
      %1133 = vmatpush1.bf16.msra.mxu0 0
      %1134 = vmatprep.subr.bf16.mxu0 0
      %1135 = vmatpush1.bf16.msra.mxu0 0
      %1136 = vmatprep.subr.bf16.mxu0 0
      %1137 = vmatpush1.bf16.msra.mxu0 0
      %1138 = vmatprep.subr.bf16.mxu0 0
      %1139 = vmatpush1.bf16.msra.mxu0 0
      %1140 = vmatprep.subr.bf16.mxu0 0
      %1141 = vmatpush1.bf16.msra.mxu0 0
      %1142 = vmatprep.subr.bf16.mxu0 0
      %1143 = vmatpush1.bf16.msra.mxu0 0
      %1144 = vmatprep.subr.bf16.mxu0 0
      %1145 = vmatpush1.bf16.msra.mxu0 0
      %1146 = vmatprep.subr.bf16.mxu0 0
      %1147 = vmatpush1.bf16.msra.mxu0 0
      %1148 = vmatprep.mubr.bf16.mxu0 0
      %1149 = vmatmul.mubr.bf16.gmra.mrb[0].mxu0 %v1114
      %v1150 = vpop.f32.mrb[0].mxu0
      %v1151 = vadd.f32 0.0, %v1150
      %v1152 = vpop.f32.mrb[0].mxu0
      %v1153 = vpop.f32.mrb[0].mxu0
      %v1154 = vadd.f32 0.0, %v1153
      %v1155 = vpop.f32.mrb[0].mxu0
      %1156 = vdwg.mxu0
      %v1157 = vadd.f32 %v1102, %v1151
      %v1158 = vadd.f32 %v1103, %v1154
      %s1159 = scalar_lea.vmem %s4, 32
      %v1160 = vld [vmem:[%s1159] sm:$0xf]
      %v1161 = vld [vmem:[%s1159 + $0x4] sm:$0xf]
      %v1164 = vunpack.c.l.b16 %v1160
      %v1165 = vunpack.c.l.b16 %v1161
      %v1166 = vpack.c.b16 %v1165, %v1164
      %v1169 = vsel %vm954, %v922, 0
      %1171 = vmatprep.subr.bf16.mxu0 0
      %1172 = vmatpush1.bf16.msra.mxu0 %v1166
      %1173 = vmatprep.subr.bf16.mxu0 0
      %1174 = vmatpush1.bf16.msra.mxu0 0
      %1175 = vmatprep.subr.bf16.mxu0 0
      %1176 = vmatpush1.bf16.msra.mxu0 0
      %1177 = vmatprep.subr.bf16.mxu0 0
      %1178 = vmatpush1.bf16.msra.mxu0 0
      %1179 = vmatprep.subr.bf16.mxu0 0
      %1180 = vmatpush1.bf16.msra.mxu0 0
      %1181 = vmatprep.subr.bf16.mxu0 0
      %1182 = vmatpush1.bf16.msra.mxu0 0
      %1183 = vmatprep.subr.bf16.mxu0 0
      %1184 = vmatpush1.bf16.msra.mxu0 0
      %1185 = vmatprep.subr.bf16.mxu0 0
      %1186 = vmatpush1.bf16.msra.mxu0 0
      %1187 = vmatprep.subr.bf16.mxu0 0
      %1188 = vmatpush1.bf16.msra.mxu0 0
      %1189 = vmatprep.subr.bf16.mxu0 0
      %1190 = vmatpush1.bf16.msra.mxu0 0
      %1191 = vmatprep.subr.bf16.mxu0 0
      %1192 = vmatpush1.bf16.msra.mxu0 0
      %1193 = vmatprep.subr.bf16.mxu0 0
      %1194 = vmatpush1.bf16.msra.mxu0 0
      %1195 = vmatprep.subr.bf16.mxu0 0
      %1196 = vmatpush1.bf16.msra.mxu0 0
      %1197 = vmatprep.subr.bf16.mxu0 0
      %1198 = vmatpush1.bf16.msra.mxu0 0
      %1199 = vmatprep.subr.bf16.mxu0 0
      %1200 = vmatpush1.bf16.msra.mxu0 0
      %1201 = vmatprep.subr.bf16.mxu0 0
      %1202 = vmatpush1.bf16.msra.mxu0 0
      %1203 = vmatprep.mubr.bf16.mxu0 0
      %1204 = vmatmul.mubr.bf16.gmra.mrb[0].mxu0 %v1169
      %v1205 = vpop.f32.mrb[0].mxu0
      %v1206 = vadd.f32 0.0, %v1205
      %v1207 = vpop.f32.mrb[0].mxu0
      %v1208 = vpop.f32.mrb[0].mxu0
      %v1209 = vadd.f32 0.0, %v1208
      %v1210 = vpop.f32.mrb[0].mxu0
      %1211 = vdwg.mxu0
      %v1212 = vadd.f32 %v1157, %v1206
      %v1213 = vadd.f32 %v1158, %v1209
      %s1214 = scalar_lea.vmem %s4, 40
      %v1215 = vld [vmem:[%s1214] sm:$0xf]
      %v1216 = vld [vmem:[%s1214 + $0x4] sm:$0xf]
      %v1219 = vunpack.c.l.b16 %v1215
      %v1220 = vunpack.c.l.b16 %v1216
      %v1221 = vpack.c.b16 %v1220, %v1219
      %v1224 = vsel %vm954, %v923, 0
      %1226 = vmatprep.subr.bf16.mxu0 0
      %1227 = vmatpush1.bf16.msra.mxu0 %v1221
      %1228 = vmatprep.subr.bf16.mxu0 0
      %1229 = vmatpush1.bf16.msra.mxu0 0
      %1230 = vmatprep.subr.bf16.mxu0 0
      %1231 = vmatpush1.bf16.msra.mxu0 0
      %1232 = vmatprep.subr.bf16.mxu0 0
      %1233 = vmatpush1.bf16.msra.mxu0 0
      %1234 = vmatprep.subr.bf16.mxu0 0
      %1235 = vmatpush1.bf16.msra.mxu0 0
      %1236 = vmatprep.subr.bf16.mxu0 0
      %1237 = vmatpush1.bf16.msra.mxu0 0
      %1238 = vmatprep.subr.bf16.mxu0 0
      %1239 = vmatpush1.bf16.msra.mxu0 0
      %1240 = vmatprep.subr.bf16.mxu0 0
      %1241 = vmatpush1.bf16.msra.mxu0 0
      %1242 = vmatprep.subr.bf16.mxu0 0
      %1243 = vmatpush1.bf16.msra.mxu0 0
      %1244 = vmatprep.subr.bf16.mxu0 0
      %1245 = vmatpush1.bf16.msra.mxu0 0
      %1246 = vmatprep.subr.bf16.mxu0 0
      %1247 = vmatpush1.bf16.msra.mxu0 0
      %1248 = vmatprep.subr.bf16.mxu0 0
      %1249 = vmatpush1.bf16.msra.mxu0 0
      %1250 = vmatprep.subr.bf16.mxu0 0
      %1251 = vmatpush1.bf16.msra.mxu0 0
      %1252 = vmatprep.subr.bf16.mxu0 0
      %1253 = vmatpush1.bf16.msra.mxu0 0
      %1254 = vmatprep.subr.bf16.mxu0 0
      %1255 = vmatpush1.bf16.msra.mxu0 0
      %1256 = vmatprep.subr.bf16.mxu0 0
      %1257 = vmatpush1.bf16.msra.mxu0 0
      %1258 = vmatprep.mubr.bf16.mxu0 0
      %1259 = vmatmul.mubr.bf16.gmra.mrb[0].mxu0 %v1224
      %v1260 = vpop.f32.mrb[0].mxu0
      %v1261 = vadd.f32 0.0, %v1260
      %v1262 = vpop.f32.mrb[0].mxu0
      %v1263 = vpop.f32.mrb[0].mxu0
      %v1264 = vadd.f32 0.0, %v1263
      %v1265 = vpop.f32.mrb[0].mxu0
      %1266 = vdwg.mxu0
      %v1267 = vadd.f32 %v1212, %v1261
      %v1268 = vadd.f32 %v1213, %v1264
      %s1269 = scalar_lea.vmem %s4, 48
      %v1270 = vld [vmem:[%s1269] sm:$0xf]
      %v1271 = vld [vmem:[%s1269 + $0x4] sm:$0xf]
      %v1274 = vunpack.c.l.b16 %v1270
      %v1275 = vunpack.c.l.b16 %v1271
      %v1276 = vpack.c.b16 %v1275, %v1274
      %v1279 = vsel %vm954, %v924, 0
      %1281 = vmatprep.subr.bf16.mxu0 0
      %1282 = vmatpush1.bf16.msra.mxu0 %v1276
      %1283 = vmatprep.subr.bf16.mxu0 0
      %1284 = vmatpush1.bf16.msra.mxu0 0
      %1285 = vmatprep.subr.bf16.mxu0 0
      %1286 = vmatpush1.bf16.msra.mxu0 0
      %1287 = vmatprep.subr.bf16.mxu0 0
      %1288 = vmatpush1.bf16.msra.mxu0 0
      %1289 = vmatprep.subr.bf16.mxu0 0
      %1290 = vmatpush1.bf16.msra.mxu0 0
      %1291 = vmatprep.subr.bf16.mxu0 0
      %1292 = vmatpush1.bf16.msra.mxu0 0
      %1293 = vmatprep.subr.bf16.mxu0 0
      %1294 = vmatpush1.bf16.msra.mxu0 0
      %1295 = vmatprep.subr.bf16.mxu0 0
      %1296 = vmatpush1.bf16.msra.mxu0 0
      %1297 = vmatprep.subr.bf16.mxu0 0
      %1298 = vmatpush1.bf16.msra.mxu0 0
      %1299 = vmatprep.subr.bf16.mxu0 0
      %1300 = vmatpush1.bf16.msra.mxu0 0
      %1301 = vmatprep.subr.bf16.mxu0 0
      %1302 = vmatpush1.bf16.msra.mxu0 0
      %1303 = vmatprep.subr.bf16.mxu0 0
      %1304 = vmatpush1.bf16.msra.mxu0 0
      %1305 = vmatprep.subr.bf16.mxu0 0
      %1306 = vmatpush1.bf16.msra.mxu0 0
      %1307 = vmatprep.subr.bf16.mxu0 0
      %1308 = vmatpush1.bf16.msra.mxu0 0
      %1309 = vmatprep.subr.bf16.mxu0 0
      %1310 = vmatpush1.bf16.msra.mxu0 0
      %1311 = vmatprep.subr.bf16.mxu0 0
      %1312 = vmatpush1.bf16.msra.mxu0 0
      %1313 = vmatprep.mubr.bf16.mxu0 0
      %1314 = vmatmul.mubr.bf16.gmra.mrb[0].mxu0 %v1279
      %v1315 = vpop.f32.mrb[0].mxu0
      %v1316 = vadd.f32 0.0, %v1315
      %v1317 = vpop.f32.mrb[0].mxu0
      %v1318 = vpop.f32.mrb[0].mxu0
      %v1319 = vadd.f32 0.0, %v1318
      %v1320 = vpop.f32.mrb[0].mxu0
      %1321 = vdwg.mxu0
      %v1322 = vadd.f32 %v1267, %v1316
      %v1323 = vadd.f32 %v1268, %v1319
      %s1324 = scalar_lea.vmem %s4, 56
      %v1325 = vld [vmem:[%s1324] sm:$0xf]
      %v1326 = vld [vmem:[%s1324 + $0x4] sm:$0xf]
      %v1329 = vunpack.c.l.b16 %v1325
      %v1330 = vunpack.c.l.b16 %v1326
      %v1331 = vpack.c.b16 %v1330, %v1329
      %v1334 = vsel %vm954, %v925, 0
      %1336 = vmatprep.subr.bf16.mxu0 0
      %1337 = vmatpush1.bf16.msra.mxu0 %v1331
      %1338 = vmatprep.subr.bf16.mxu0 0
      %1339 = vmatpush1.bf16.msra.mxu0 0
      %1340 = vmatprep.subr.bf16.mxu0 0
      %1341 = vmatpush1.bf16.msra.mxu0 0
      %1342 = vmatprep.subr.bf16.mxu0 0
      %1343 = vmatpush1.bf16.msra.mxu0 0
      %1344 = vmatprep.subr.bf16.mxu0 0
      %1345 = vmatpush1.bf16.msra.mxu0 0
      %1346 = vmatprep.subr.bf16.mxu0 0
      %1347 = vmatpush1.bf16.msra.mxu0 0
      %1348 = vmatprep.subr.bf16.mxu0 0
      %1349 = vmatpush1.bf16.msra.mxu0 0
      %1350 = vmatprep.subr.bf16.mxu0 0
      %1351 = vmatpush1.bf16.msra.mxu0 0
      %1352 = vmatprep.subr.bf16.mxu0 0
      %1353 = vmatpush1.bf16.msra.mxu0 0
      %1354 = vmatprep.subr.bf16.mxu0 0
      %1355 = vmatpush1.bf16.msra.mxu0 0
      %1356 = vmatprep.subr.bf16.mxu0 0
      %1357 = vmatpush1.bf16.msra.mxu0 0
      %1358 = vmatprep.subr.bf16.mxu0 0
      %1359 = vmatpush1.bf16.msra.mxu0 0
      %1360 = vmatprep.subr.bf16.mxu0 0
      %1361 = vmatpush1.bf16.msra.mxu0 0
      %1362 = vmatprep.subr.bf16.mxu0 0
      %1363 = vmatpush1.bf16.msra.mxu0 0
      %1364 = vmatprep.subr.bf16.mxu0 0
      %1365 = vmatpush1.bf16.msra.mxu0 0
      %1366 = vmatprep.subr.bf16.mxu0 0
      %1367 = vmatpush1.bf16.msra.mxu0 0
      %1368 = vmatprep.mubr.bf16.mxu0 0
      %1369 = vmatmul.mubr.bf16.gmra.mrb[0].mxu0 %v1334
      %v1370 = vpop.f32.mrb[0].mxu0
      %v1371 = vadd.f32 0.0, %v1370
      %v1372 = vpop.f32.mrb[0].mxu0
      %v1373 = vpop.f32.mrb[0].mxu0
      %v1374 = vadd.f32 0.0, %v1373
      %v1375 = vpop.f32.mrb[0].mxu0
      %1376 = vdwg.mxu0
      %v1377 = vadd.f32 %v1322, %v1371
      %v1378 = vadd.f32 %v1323, %v1374
      %s1379 = scalar_lea.vmem %s4, 64
      %v1380 = vld [vmem:[%s1379] sm:$0xf]
      %v1381 = vld [vmem:[%s1379 + $0x4] sm:$0xf]
      %v1384 = vunpack.c.l.b16 %v1380
      %v1385 = vunpack.c.l.b16 %v1381
      %v1386 = vpack.c.b16 %v1385, %v1384
      %v1389 = vsel %vm954, %v926, 0
      %1391 = vmatprep.subr.bf16.mxu0 0
      %1392 = vmatpush1.bf16.msra.mxu0 %v1386
      %1393 = vmatprep.subr.bf16.mxu0 0
      %1394 = vmatpush1.bf16.msra.mxu0 0
      %1395 = vmatprep.subr.bf16.mxu0 0
      %1396 = vmatpush1.bf16.msra.mxu0 0
      %1397 = vmatprep.subr.bf16.mxu0 0
      %1398 = vmatpush1.bf16.msra.mxu0 0
      %1399 = vmatprep.subr.bf16.mxu0 0
      %1400 = vmatpush1.bf16.msra.mxu0 0
      %1401 = vmatprep.subr.bf16.mxu0 0
      %1402 = vmatpush1.bf16.msra.mxu0 0
      %1403 = vmatprep.subr.bf16.mxu0 0
      %1404 = vmatpush1.bf16.msra.mxu0 0
      %1405 = vmatprep.subr.bf16.mxu0 0
      %1406 = vmatpush1.bf16.msra.mxu0 0
      %1407 = vmatprep.subr.bf16.mxu0 0
      %1408 = vmatpush1.bf16.msra.mxu0 0
      %1409 = vmatprep.subr.bf16.mxu0 0
      %1410 = vmatpush1.bf16.msra.mxu0 0
      %1411 = vmatprep.subr.bf16.mxu0 0
      %1412 = vmatpush1.bf16.msra.mxu0 0
      %1413 = vmatprep.subr.bf16.mxu0 0
      %1414 = vmatpush1.bf16.msra.mxu0 0
      %1415 = vmatprep.subr.bf16.mxu0 0
      %1416 = vmatpush1.bf16.msra.mxu0 0
      %1417 = vmatprep.subr.bf16.mxu0 0
      %1418 = vmatpush1.bf16.msra.mxu0 0
      %1419 = vmatprep.subr.bf16.mxu0 0
      %1420 = vmatpush1.bf16.msra.mxu0 0
      %1421 = vmatprep.subr.bf16.mxu0 0
      %1422 = vmatpush1.bf16.msra.mxu0 0
      %1423 = vmatprep.mubr.bf16.mxu0 0
      %1424 = vmatmul.mubr.bf16.gmra.mrb[0].mxu0 %v1389
      %v1425 = vpop.f32.mrb[0].mxu0
      %v1426 = vadd.f32 0.0, %v1425
      %v1427 = vpop.f32.mrb[0].mxu0
      %v1428 = vpop.f32.mrb[0].mxu0
      %v1429 = vadd.f32 0.0, %v1428
      %v1430 = vpop.f32.mrb[0].mxu0
      %1431 = vdwg.mxu0
      %v1432 = vadd.f32 %v1377, %v1426
      %v1433 = vadd.f32 %v1378, %v1429
      %s1434 = scalar_lea.vmem %s4, 72
      %v1435 = vld [vmem:[%s1434] sm:$0xf]
      %v1436 = vld [vmem:[%s1434 + $0x4] sm:$0xf]
      %v1439 = vunpack.c.l.b16 %v1435
      %v1440 = vunpack.c.l.b16 %v1436
      %v1441 = vpack.c.b16 %v1440, %v1439
      %v1444 = vsel %vm954, %v927, 0
      %1446 = vmatprep.subr.bf16.mxu0 0
      %1447 = vmatpush1.bf16.msra.mxu0 %v1441
      %1448 = vmatprep.subr.bf16.mxu0 0
      %1449 = vmatpush1.bf16.msra.mxu0 0
      %1450 = vmatprep.subr.bf16.mxu0 0
      %1451 = vmatpush1.bf16.msra.mxu0 0
      %1452 = vmatprep.subr.bf16.mxu0 0
      %1453 = vmatpush1.bf16.msra.mxu0 0
      %1454 = vmatprep.subr.bf16.mxu0 0
      %1455 = vmatpush1.bf16.msra.mxu0 0
      %1456 = vmatprep.subr.bf16.mxu0 0
      %1457 = vmatpush1.bf16.msra.mxu0 0
      %1458 = vmatprep.subr.bf16.mxu0 0
      %1459 = vmatpush1.bf16.msra.mxu0 0
      %1460 = vmatprep.subr.bf16.mxu0 0
      %1461 = vmatpush1.bf16.msra.mxu0 0
      %1462 = vmatprep.subr.bf16.mxu0 0
      %1463 = vmatpush1.bf16.msra.mxu0 0
      %1464 = vmatprep.subr.bf16.mxu0 0
      %1465 = vmatpush1.bf16.msra.mxu0 0
      %1466 = vmatprep.subr.bf16.mxu0 0
      %1467 = vmatpush1.bf16.msra.mxu0 0
      %1468 = vmatprep.subr.bf16.mxu0 0
      %1469 = vmatpush1.bf16.msra.mxu0 0
      %1470 = vmatprep.subr.bf16.mxu0 0
      %1471 = vmatpush1.bf16.msra.mxu0 0
      %1472 = vmatprep.subr.bf16.mxu0 0
      %1473 = vmatpush1.bf16.msra.mxu0 0
      %1474 = vmatprep.subr.bf16.mxu0 0
      %1475 = vmatpush1.bf16.msra.mxu0 0
      %1476 = vmatprep.subr.bf16.mxu0 0
      %1477 = vmatpush1.bf16.msra.mxu0 0
      %1478 = vmatprep.mubr.bf16.mxu0 0
      %1479 = vmatmul.mubr.bf16.gmra.mrb[0].mxu0 %v1444
      %v1480 = vpop.f32.mrb[0].mxu0
      %v1481 = vadd.f32 0.0, %v1480
      %v1482 = vpop.f32.mrb[0].mxu0
      %v1483 = vpop.f32.mrb[0].mxu0
      %v1484 = vadd.f32 0.0, %v1483
      %v1485 = vpop.f32.mrb[0].mxu0
      %1486 = vdwg.mxu0
      %v1487 = vadd.f32 %v1432, %v1481
      %v1488 = vadd.f32 %v1433, %v1484
      %s1489 = scalar_lea.vmem %s4, 80
      %v1490 = vld [vmem:[%s1489] sm:$0xf]
      %v1491 = vld [vmem:[%s1489 + $0x4] sm:$0xf]
      %v1494 = vunpack.c.l.b16 %v1490
      %v1495 = vunpack.c.l.b16 %v1491
      %v1496 = vpack.c.b16 %v1495, %v1494
      %v1499 = vsel %vm954, %v928, 0
      %1501 = vmatprep.subr.bf16.mxu0 0
      %1502 = vmatpush1.bf16.msra.mxu0 %v1496
      %1503 = vmatprep.subr.bf16.mxu0 0
      %1504 = vmatpush1.bf16.msra.mxu0 0
      %1505 = vmatprep.subr.bf16.mxu0 0
      %1506 = vmatpush1.bf16.msra.mxu0 0
      %1507 = vmatprep.subr.bf16.mxu0 0
      %1508 = vmatpush1.bf16.msra.mxu0 0
      %1509 = vmatprep.subr.bf16.mxu0 0
      %1510 = vmatpush1.bf16.msra.mxu0 0
      %1511 = vmatprep.subr.bf16.mxu0 0
      %1512 = vmatpush1.bf16.msra.mxu0 0
      %1513 = vmatprep.subr.bf16.mxu0 0
      %1514 = vmatpush1.bf16.msra.mxu0 0
      %1515 = vmatprep.subr.bf16.mxu0 0
      %1516 = vmatpush1.bf16.msra.mxu0 0
      %1517 = vmatprep.subr.bf16.mxu0 0
      %1518 = vmatpush1.bf16.msra.mxu0 0
      %1519 = vmatprep.subr.bf16.mxu0 0
      %1520 = vmatpush1.bf16.msra.mxu0 0
      %1521 = vmatprep.subr.bf16.mxu0 0
      %1522 = vmatpush1.bf16.msra.mxu0 0
      %1523 = vmatprep.subr.bf16.mxu0 0
      %1524 = vmatpush1.bf16.msra.mxu0 0
      %1525 = vmatprep.subr.bf16.mxu0 0
      %1526 = vmatpush1.bf16.msra.mxu0 0
      %1527 = vmatprep.subr.bf16.mxu0 0
      %1528 = vmatpush1.bf16.msra.mxu0 0
      %1529 = vmatprep.subr.bf16.mxu0 0
      %1530 = vmatpush1.bf16.msra.mxu0 0
      %1531 = vmatprep.subr.bf16.mxu0 0
      %1532 = vmatpush1.bf16.msra.mxu0 0
      %1533 = vmatprep.mubr.bf16.mxu0 0
      %1534 = vmatmul.mubr.bf16.gmra.mrb[0].mxu0 %v1499
      %v1535 = vpop.f32.mrb[0].mxu0
      %v1536 = vadd.f32 0.0, %v1535
      %v1537 = vpop.f32.mrb[0].mxu0
      %v1538 = vpop.f32.mrb[0].mxu0
      %v1539 = vadd.f32 0.0, %v1538
      %v1540 = vpop.f32.mrb[0].mxu0
      %1541 = vdwg.mxu0
      %v1542 = vadd.f32 %v1487, %v1536
      %v1543 = vadd.f32 %v1488, %v1539
      %s1544 = scalar_lea.vmem %s4, 88
      %v1545 = vld [vmem:[%s1544] sm:$0xf]
      %v1546 = vld [vmem:[%s1544 + $0x4] sm:$0xf]
      %v1549 = vunpack.c.l.b16 %v1545
      %v1550 = vunpack.c.l.b16 %v1546
      %v1551 = vpack.c.b16 %v1550, %v1549
      %v1554 = vsel %vm954, %v929, 0
      %1556 = vmatprep.subr.bf16.mxu0 0
      %1557 = vmatpush1.bf16.msra.mxu0 %v1551
      %1558 = vmatprep.subr.bf16.mxu0 0
      %1559 = vmatpush1.bf16.msra.mxu0 0
      %1560 = vmatprep.subr.bf16.mxu0 0
      %1561 = vmatpush1.bf16.msra.mxu0 0
      %1562 = vmatprep.subr.bf16.mxu0 0
      %1563 = vmatpush1.bf16.msra.mxu0 0
      %1564 = vmatprep.subr.bf16.mxu0 0
      %1565 = vmatpush1.bf16.msra.mxu0 0
      %1566 = vmatprep.subr.bf16.mxu0 0
      %1567 = vmatpush1.bf16.msra.mxu0 0
      %1568 = vmatprep.subr.bf16.mxu0 0
      %1569 = vmatpush1.bf16.msra.mxu0 0
      %1570 = vmatprep.subr.bf16.mxu0 0
      %1571 = vmatpush1.bf16.msra.mxu0 0
      %1572 = vmatprep.subr.bf16.mxu0 0
      %1573 = vmatpush1.bf16.msra.mxu0 0
      %1574 = vmatprep.subr.bf16.mxu0 0
      %1575 = vmatpush1.bf16.msra.mxu0 0
      %1576 = vmatprep.subr.bf16.mxu0 0
      %1577 = vmatpush1.bf16.msra.mxu0 0
      %1578 = vmatprep.subr.bf16.mxu0 0
      %1579 = vmatpush1.bf16.msra.mxu0 0
      %1580 = vmatprep.subr.bf16.mxu0 0
      %1581 = vmatpush1.bf16.msra.mxu0 0
      %1582 = vmatprep.subr.bf16.mxu0 0
      %1583 = vmatpush1.bf16.msra.mxu0 0
      %1584 = vmatprep.subr.bf16.mxu0 0
      %1585 = vmatpush1.bf16.msra.mxu0 0
      %1586 = vmatprep.subr.bf16.mxu0 0
      %1587 = vmatpush1.bf16.msra.mxu0 0
      %1588 = vmatprep.mubr.bf16.mxu0 0
      %1589 = vmatmul.mubr.bf16.gmra.mrb[0].mxu0 %v1554
      %v1590 = vpop.f32.mrb[0].mxu0
      %v1591 = vadd.f32 0.0, %v1590
      %v1592 = vpop.f32.mrb[0].mxu0
      %v1593 = vpop.f32.mrb[0].mxu0
      %v1594 = vadd.f32 0.0, %v1593
      %v1595 = vpop.f32.mrb[0].mxu0
      %1596 = vdwg.mxu0
      %v1597 = vadd.f32 %v1542, %v1591
      %v1598 = vadd.f32 %v1543, %v1594
      %s1599 = scalar_lea.vmem %s4, 96
      %v1600 = vld [vmem:[%s1599] sm:$0xf]
      %v1601 = vld [vmem:[%s1599 + $0x4] sm:$0xf]
      %v1604 = vunpack.c.l.b16 %v1600
      %v1605 = vunpack.c.l.b16 %v1601
      %v1606 = vpack.c.b16 %v1605, %v1604
      %v1609 = vsel %vm954, %v930, 0
      %1611 = vmatprep.subr.bf16.mxu0 0
      %1612 = vmatpush1.bf16.msra.mxu0 %v1606
      %1613 = vmatprep.subr.bf16.mxu0 0
      %1614 = vmatpush1.bf16.msra.mxu0 0
      %1615 = vmatprep.subr.bf16.mxu0 0
      %1616 = vmatpush1.bf16.msra.mxu0 0
      %1617 = vmatprep.subr.bf16.mxu0 0
      %1618 = vmatpush1.bf16.msra.mxu0 0
      %1619 = vmatprep.subr.bf16.mxu0 0
      %1620 = vmatpush1.bf16.msra.mxu0 0
      %1621 = vmatprep.subr.bf16.mxu0 0
      %1622 = vmatpush1.bf16.msra.mxu0 0
      %1623 = vmatprep.subr.bf16.mxu0 0
      %1624 = vmatpush1.bf16.msra.mxu0 0
      %1625 = vmatprep.subr.bf16.mxu0 0
      %1626 = vmatpush1.bf16.msra.mxu0 0
      %1627 = vmatprep.subr.bf16.mxu0 0
      %1628 = vmatpush1.bf16.msra.mxu0 0
      %1629 = vmatprep.subr.bf16.mxu0 0
      %1630 = vmatpush1.bf16.msra.mxu0 0
      %1631 = vmatprep.subr.bf16.mxu0 0
      %1632 = vmatpush1.bf16.msra.mxu0 0
      %1633 = vmatprep.subr.bf16.mxu0 0
      %1634 = vmatpush1.bf16.msra.mxu0 0
      %1635 = vmatprep.subr.bf16.mxu0 0
      %1636 = vmatpush1.bf16.msra.mxu0 0
      %1637 = vmatprep.subr.bf16.mxu0 0
      %1638 = vmatpush1.bf16.msra.mxu0 0
      %1639 = vmatprep.subr.bf16.mxu0 0
      %1640 = vmatpush1.bf16.msra.mxu0 0
      %1641 = vmatprep.subr.bf16.mxu0 0
      %1642 = vmatpush1.bf16.msra.mxu0 0
      %1643 = vmatprep.mubr.bf16.mxu0 0
      %1644 = vmatmul.mubr.bf16.gmra.mrb[0].mxu0 %v1609
      %v1645 = vpop.f32.mrb[0].mxu0
      %v1646 = vadd.f32 0.0, %v1645
      %v1647 = vpop.f32.mrb[0].mxu0
      %v1648 = vpop.f32.mrb[0].mxu0
      %v1649 = vadd.f32 0.0, %v1648
      %v1650 = vpop.f32.mrb[0].mxu0
      %1651 = vdwg.mxu0
      %v1652 = vadd.f32 %v1597, %v1646
      %v1653 = vadd.f32 %v1598, %v1649
      %s1654 = scalar_lea.vmem %s4, 104
      %v1655 = vld [vmem:[%s1654] sm:$0xf]
      %v1656 = vld [vmem:[%s1654 + $0x4] sm:$0xf]
      %v1659 = vunpack.c.l.b16 %v1655
      %v1660 = vunpack.c.l.b16 %v1656
      %v1661 = vpack.c.b16 %v1660, %v1659
      %v1664 = vsel %vm954, %v931, 0
      %1666 = vmatprep.subr.bf16.mxu0 0
      %1667 = vmatpush1.bf16.msra.mxu0 %v1661
      %1668 = vmatprep.subr.bf16.mxu0 0
      %1669 = vmatpush1.bf16.msra.mxu0 0
      %1670 = vmatprep.subr.bf16.mxu0 0
      %1671 = vmatpush1.bf16.msra.mxu0 0
      %1672 = vmatprep.subr.bf16.mxu0 0
      %1673 = vmatpush1.bf16.msra.mxu0 0
      %1674 = vmatprep.subr.bf16.mxu0 0
      %1675 = vmatpush1.bf16.msra.mxu0 0
      %1676 = vmatprep.subr.bf16.mxu0 0
      %1677 = vmatpush1.bf16.msra.mxu0 0
      %1678 = vmatprep.subr.bf16.mxu0 0
      %1679 = vmatpush1.bf16.msra.mxu0 0
      %1680 = vmatprep.subr.bf16.mxu0 0
      %1681 = vmatpush1.bf16.msra.mxu0 0
      %1682 = vmatprep.subr.bf16.mxu0 0
      %1683 = vmatpush1.bf16.msra.mxu0 0
      %1684 = vmatprep.subr.bf16.mxu0 0
      %1685 = vmatpush1.bf16.msra.mxu0 0
      %1686 = vmatprep.subr.bf16.mxu0 0
      %1687 = vmatpush1.bf16.msra.mxu0 0
      %1688 = vmatprep.subr.bf16.mxu0 0
      %1689 = vmatpush1.bf16.msra.mxu0 0
      %1690 = vmatprep.subr.bf16.mxu0 0
      %1691 = vmatpush1.bf16.msra.mxu0 0
      %1692 = vmatprep.subr.bf16.mxu0 0
      %1693 = vmatpush1.bf16.msra.mxu0 0
      %1694 = vmatprep.subr.bf16.mxu0 0
      %1695 = vmatpush1.bf16.msra.mxu0 0
      %1696 = vmatprep.subr.bf16.mxu0 0
      %1697 = vmatpush1.bf16.msra.mxu0 0
      %1698 = vmatprep.mubr.bf16.mxu0 0
      %1699 = vmatmul.mubr.bf16.gmra.mrb[0].mxu0 %v1664
      %v1700 = vpop.f32.mrb[0].mxu0
      %v1701 = vadd.f32 0.0, %v1700
      %v1702 = vpop.f32.mrb[0].mxu0
      %v1703 = vpop.f32.mrb[0].mxu0
      %v1704 = vadd.f32 0.0, %v1703
      %v1705 = vpop.f32.mrb[0].mxu0
      %1706 = vdwg.mxu0
      %v1707 = vadd.f32 %v1652, %v1701
      %v1708 = vadd.f32 %v1653, %v1704
      %s1709 = scalar_lea.vmem %s4, 112
      %v1710 = vld [vmem:[%s1709] sm:$0xf]
      %v1711 = vld [vmem:[%s1709 + $0x4] sm:$0xf]
      %v1714 = vunpack.c.l.b16 %v1710
      %v1715 = vunpack.c.l.b16 %v1711
      %v1716 = vpack.c.b16 %v1715, %v1714
      %v1719 = vsel %vm954, %v932, 0
      %1721 = vmatprep.subr.bf16.mxu0 0
      %1722 = vmatpush1.bf16.msra.mxu0 %v1716
      %1723 = vmatprep.subr.bf16.mxu0 0
      %1724 = vmatpush1.bf16.msra.mxu0 0
      %1725 = vmatprep.subr.bf16.mxu0 0
      %1726 = vmatpush1.bf16.msra.mxu0 0
      %1727 = vmatprep.subr.bf16.mxu0 0
      %1728 = vmatpush1.bf16.msra.mxu0 0
      %1729 = vmatprep.subr.bf16.mxu0 0
      %1730 = vmatpush1.bf16.msra.mxu0 0
      %1731 = vmatprep.subr.bf16.mxu0 0
      %1732 = vmatpush1.bf16.msra.mxu0 0
      %1733 = vmatprep.subr.bf16.mxu0 0
      %1734 = vmatpush1.bf16.msra.mxu0 0
      %1735 = vmatprep.subr.bf16.mxu0 0
      %1736 = vmatpush1.bf16.msra.mxu0 0
      %1737 = vmatprep.subr.bf16.mxu0 0
      %1738 = vmatpush1.bf16.msra.mxu0 0
      %1739 = vmatprep.subr.bf16.mxu0 0
      %1740 = vmatpush1.bf16.msra.mxu0 0
      %1741 = vmatprep.subr.bf16.mxu0 0
      %1742 = vmatpush1.bf16.msra.mxu0 0
      %1743 = vmatprep.subr.bf16.mxu0 0
      %1744 = vmatpush1.bf16.msra.mxu0 0
      %1745 = vmatprep.subr.bf16.mxu0 0
      %1746 = vmatpush1.bf16.msra.mxu0 0
      %1747 = vmatprep.subr.bf16.mxu0 0
      %1748 = vmatpush1.bf16.msra.mxu0 0
      %1749 = vmatprep.subr.bf16.mxu0 0
      %1750 = vmatpush1.bf16.msra.mxu0 0
      %1751 = vmatprep.subr.bf16.mxu0 0
      %1752 = vmatpush1.bf16.msra.mxu0 0
      %1753 = vmatprep.mubr.bf16.mxu0 0
      %1754 = vmatmul.mubr.bf16.gmra.mrb[0].mxu0 %v1719
      %v1755 = vpop.f32.mrb[0].mxu0
      %v1756 = vadd.f32 0.0, %v1755
      %v1757 = vpop.f32.mrb[0].mxu0
      %v1758 = vpop.f32.mrb[0].mxu0
      %v1759 = vadd.f32 0.0, %v1758
      %v1760 = vpop.f32.mrb[0].mxu0
      %1761 = vdwg.mxu0
      %v1762 = vadd.f32 %v1707, %v1756
      %v1763 = vadd.f32 %v1708, %v1759
      %s1764 = scalar_lea.vmem %s4, 120
      %v1765 = vld [vmem:[%s1764] sm:$0xf]
      %v1766 = vld [vmem:[%s1764 + $0x4] sm:$0xf]
      %v1769 = vunpack.c.l.b16 %v1765
      %v1770 = vunpack.c.l.b16 %v1766
      %v1771 = vpack.c.b16 %v1770, %v1769
      %v1774 = vsel %vm954, %v933, 0
      %1776 = vmatprep.subr.bf16.mxu0 0
      %1777 = vmatpush1.bf16.msra.mxu0 %v1771
      %1778 = vmatprep.subr.bf16.mxu0 0
      %1779 = vmatpush1.bf16.msra.mxu0 0
      %1780 = vmatprep.subr.bf16.mxu0 0
      %1781 = vmatpush1.bf16.msra.mxu0 0
      %1782 = vmatprep.subr.bf16.mxu0 0
      %1783 = vmatpush1.bf16.msra.mxu0 0
      %1784 = vmatprep.subr.bf16.mxu0 0
      %1785 = vmatpush1.bf16.msra.mxu0 0
      %1786 = vmatprep.subr.bf16.mxu0 0
      %1787 = vmatpush1.bf16.msra.mxu0 0
      %1788 = vmatprep.subr.bf16.mxu0 0
      %1789 = vmatpush1.bf16.msra.mxu0 0
      %1790 = vmatprep.subr.bf16.mxu0 0
      %1791 = vmatpush1.bf16.msra.mxu0 0
      %1792 = vmatprep.subr.bf16.mxu0 0
      %1793 = vmatpush1.bf16.msra.mxu0 0
      %1794 = vmatprep.subr.bf16.mxu0 0
      %1795 = vmatpush1.bf16.msra.mxu0 0
      %1796 = vmatprep.subr.bf16.mxu0 0
      %1797 = vmatpush1.bf16.msra.mxu0 0
      %1798 = vmatprep.subr.bf16.mxu0 0
      %1799 = vmatpush1.bf16.msra.mxu0 0
      %1800 = vmatprep.subr.bf16.mxu0 0
      %1801 = vmatpush1.bf16.msra.mxu0 0
      %1802 = vmatprep.subr.bf16.mxu0 0
      %1803 = vmatpush1.bf16.msra.mxu0 0
      %1804 = vmatprep.subr.bf16.mxu0 0
      %1805 = vmatpush1.bf16.msra.mxu0 0
      %1806 = vmatprep.subr.bf16.mxu0 0
      %1807 = vmatpush1.bf16.msra.mxu0 0
      %1808 = vmatprep.mubr.bf16.mxu0 0
      %1809 = vmatmul.mubr.bf16.gmra.mrb[0].mxu0 %v1774
      %v1810 = vpop.f32.mrb[0].mxu0
      %v1811 = vadd.f32 0.0, %v1810
      %v1812 = vpop.f32.mrb[0].mxu0
      %v1813 = vpop.f32.mrb[0].mxu0
      %v1814 = vadd.f32 0.0, %v1813
      %v1815 = vpop.f32.mrb[0].mxu0
      %1816 = vdwg.mxu0
      %v1817 = vadd.f32 %v1762, %v1811
      %v1818 = vadd.f32 %v1763, %v1814
      %s1819 = scalar_lea.vmem %s4, 128
      %v1820 = vld [vmem:[%s1819] sm:$0xf]
      %v1821 = vld [vmem:[%s1819 + $0x4] sm:$0xf]
      %v1824 = vunpack.c.l.b16 %v1820
      %v1825 = vunpack.c.l.b16 %v1821
      %v1826 = vpack.c.b16 %v1825, %v1824
      %v1829 = vsel %vm954, %v934, 0
      %1831 = vmatprep.subr.bf16.mxu0 0
      %1832 = vmatpush1.bf16.msra.mxu0 %v1826
      %1833 = vmatprep.subr.bf16.mxu0 0
      %1834 = vmatpush1.bf16.msra.mxu0 0
      %1835 = vmatprep.subr.bf16.mxu0 0
      %1836 = vmatpush1.bf16.msra.mxu0 0
      %1837 = vmatprep.subr.bf16.mxu0 0
      %1838 = vmatpush1.bf16.msra.mxu0 0
      %1839 = vmatprep.subr.bf16.mxu0 0
      %1840 = vmatpush1.bf16.msra.mxu0 0
      %1841 = vmatprep.subr.bf16.mxu0 0
      %1842 = vmatpush1.bf16.msra.mxu0 0
      %1843 = vmatprep.subr.bf16.mxu0 0
      %1844 = vmatpush1.bf16.msra.mxu0 0
      %1845 = vmatprep.subr.bf16.mxu0 0
      %1846 = vmatpush1.bf16.msra.mxu0 0
      %1847 = vmatprep.subr.bf16.mxu0 0
      %1848 = vmatpush1.bf16.msra.mxu0 0
      %1849 = vmatprep.subr.bf16.mxu0 0
      %1850 = vmatpush1.bf16.msra.mxu0 0
      %1851 = vmatprep.subr.bf16.mxu0 0
      %1852 = vmatpush1.bf16.msra.mxu0 0
      %1853 = vmatprep.subr.bf16.mxu0 0
      %1854 = vmatpush1.bf16.msra.mxu0 0
      %1855 = vmatprep.subr.bf16.mxu0 0
      %1856 = vmatpush1.bf16.msra.mxu0 0
      %1857 = vmatprep.subr.bf16.mxu0 0
      %1858 = vmatpush1.bf16.msra.mxu0 0
      %1859 = vmatprep.subr.bf16.mxu0 0
      %1860 = vmatpush1.bf16.msra.mxu0 0
      %1861 = vmatprep.subr.bf16.mxu0 0
      %1862 = vmatpush1.bf16.msra.mxu0 0
      %1863 = vmatprep.mubr.bf16.mxu0 0
      %1864 = vmatmul.mubr.bf16.gmra.mrb[0].mxu0 %v1829
      %v1865 = vpop.f32.mrb[0].mxu0
      %v1866 = vadd.f32 0.0, %v1865
      %v1867 = vpop.f32.mrb[0].mxu0
      %v1868 = vpop.f32.mrb[0].mxu0
      %v1869 = vadd.f32 0.0, %v1868
      %v1870 = vpop.f32.mrb[0].mxu0
      %1871 = vdwg.mxu0
      %v1872 = vadd.f32 %v1817, %v1866
      %v1873 = vadd.f32 %v1818, %v1869
      %s1874 = scalar_lea.vmem %s4, 136
      %v1875 = vld [vmem:[%s1874] sm:$0xf]
      %v1876 = vld [vmem:[%s1874 + $0x4] sm:$0xf]
      %v1879 = vunpack.c.l.b16 %v1875
      %v1880 = vunpack.c.l.b16 %v1876
      %v1881 = vpack.c.b16 %v1880, %v1879
      %v1884 = vsel %vm954, %v935, 0
      %1886 = vmatprep.subr.bf16.mxu0 0
      %1887 = vmatpush1.bf16.msra.mxu0 %v1881
      %1888 = vmatprep.subr.bf16.mxu0 0
      %1889 = vmatpush1.bf16.msra.mxu0 0
      %1890 = vmatprep.subr.bf16.mxu0 0
      %1891 = vmatpush1.bf16.msra.mxu0 0
      %1892 = vmatprep.subr.bf16.mxu0 0
      %1893 = vmatpush1.bf16.msra.mxu0 0
      %1894 = vmatprep.subr.bf16.mxu0 0
      %1895 = vmatpush1.bf16.msra.mxu0 0
      %1896 = vmatprep.subr.bf16.mxu0 0
      %1897 = vmatpush1.bf16.msra.mxu0 0
      %1898 = vmatprep.subr.bf16.mxu0 0
      %1899 = vmatpush1.bf16.msra.mxu0 0
      %1900 = vmatprep.subr.bf16.mxu0 0
      %1901 = vmatpush1.bf16.msra.mxu0 0
      %1902 = vmatprep.subr.bf16.mxu0 0
      %1903 = vmatpush1.bf16.msra.mxu0 0
      %1904 = vmatprep.subr.bf16.mxu0 0
      %1905 = vmatpush1.bf16.msra.mxu0 0
      %1906 = vmatprep.subr.bf16.mxu0 0
      %1907 = vmatpush1.bf16.msra.mxu0 0
      %1908 = vmatprep.subr.bf16.mxu0 0
      %1909 = vmatpush1.bf16.msra.mxu0 0
      %1910 = vmatprep.subr.bf16.mxu0 0
      %1911 = vmatpush1.bf16.msra.mxu0 0
      %1912 = vmatprep.subr.bf16.mxu0 0
      %1913 = vmatpush1.bf16.msra.mxu0 0
      %1914 = vmatprep.subr.bf16.mxu0 0
      %1915 = vmatpush1.bf16.msra.mxu0 0
      %1916 = vmatprep.subr.bf16.mxu0 0
      %1917 = vmatpush1.bf16.msra.mxu0 0
      %1918 = vmatprep.mubr.bf16.mxu0 0
      %1919 = vmatmul.mubr.bf16.gmra.mrb[0].mxu0 %v1884
      %v1920 = vpop.f32.mrb[0].mxu0
      %v1921 = vadd.f32 0.0, %v1920
      %v1922 = vpop.f32.mrb[0].mxu0
      %v1923 = vpop.f32.mrb[0].mxu0
      %v1924 = vadd.f32 0.0, %v1923
      %v1925 = vpop.f32.mrb[0].mxu0
      %1926 = vdwg.mxu0
      %v1927 = vadd.f32 %v1872, %v1921
      %v1928 = vadd.f32 %v1873, %v1924
      %s1929 = scalar_lea.vmem %s4, 144
      %v1930 = vld [vmem:[%s1929] sm:$0xf]
      %v1931 = vld [vmem:[%s1929 + $0x4] sm:$0xf]
      %v1934 = vunpack.c.l.b16 %v1930
      %v1935 = vunpack.c.l.b16 %v1931
      %v1936 = vpack.c.b16 %v1935, %v1934
      %v1939 = vsel %vm954, %v936, 0
      %1941 = vmatprep.subr.bf16.mxu0 0
      %1942 = vmatpush1.bf16.msra.mxu0 %v1936
      %1943 = vmatprep.subr.bf16.mxu0 0
      %1944 = vmatpush1.bf16.msra.mxu0 0
      %1945 = vmatprep.subr.bf16.mxu0 0
      %1946 = vmatpush1.bf16.msra.mxu0 0
      %1947 = vmatprep.subr.bf16.mxu0 0
      %1948 = vmatpush1.bf16.msra.mxu0 0
      %1949 = vmatprep.subr.bf16.mxu0 0
      %1950 = vmatpush1.bf16.msra.mxu0 0
      %1951 = vmatprep.subr.bf16.mxu0 0
      %1952 = vmatpush1.bf16.msra.mxu0 0
      %1953 = vmatprep.subr.bf16.mxu0 0
      %1954 = vmatpush1.bf16.msra.mxu0 0
      %1955 = vmatprep.subr.bf16.mxu0 0
      %1956 = vmatpush1.bf16.msra.mxu0 0
      %1957 = vmatprep.subr.bf16.mxu0 0
      %1958 = vmatpush1.bf16.msra.mxu0 0
      %1959 = vmatprep.subr.bf16.mxu0 0
      %1960 = vmatpush1.bf16.msra.mxu0 0
      %1961 = vmatprep.subr.bf16.mxu0 0
      %1962 = vmatpush1.bf16.msra.mxu0 0
      %1963 = vmatprep.subr.bf16.mxu0 0
      %1964 = vmatpush1.bf16.msra.mxu0 0
      %1965 = vmatprep.subr.bf16.mxu0 0
      %1966 = vmatpush1.bf16.msra.mxu0 0
      %1967 = vmatprep.subr.bf16.mxu0 0
      %1968 = vmatpush1.bf16.msra.mxu0 0
      %1969 = vmatprep.subr.bf16.mxu0 0
      %1970 = vmatpush1.bf16.msra.mxu0 0
      %1971 = vmatprep.subr.bf16.mxu0 0
      %1972 = vmatpush1.bf16.msra.mxu0 0
      %1973 = vmatprep.mubr.bf16.mxu0 0
      %1974 = vmatmul.mubr.bf16.gmra.mrb[0].mxu0 %v1939
      %v1975 = vpop.f32.mrb[0].mxu0
      %v1976 = vadd.f32 0.0, %v1975
      %v1977 = vpop.f32.mrb[0].mxu0
      %v1978 = vpop.f32.mrb[0].mxu0
      %v1979 = vadd.f32 0.0, %v1978
      %v1980 = vpop.f32.mrb[0].mxu0
      %1981 = vdwg.mxu0
      %v1982 = vadd.f32 %v1927, %v1976
      %v1983 = vadd.f32 %v1928, %v1979
      %s1984 = scalar_lea.vmem %s4, 152
      %v1985 = vld [vmem:[%s1984] sm:$0xf]
      %v1986 = vld [vmem:[%s1984 + $0x4] sm:$0xf]
      %v1989 = vunpack.c.l.b16 %v1985
      %v1990 = vunpack.c.l.b16 %v1986
      %v1991 = vpack.c.b16 %v1990, %v1989
      %v1994 = vsel %vm954, %v937, 0
      %1996 = vmatprep.subr.bf16.mxu0 0
      %1997 = vmatpush1.bf16.msra.mxu0 %v1991
      %1998 = vmatprep.subr.bf16.mxu0 0
      %1999 = vmatpush1.bf16.msra.mxu0 0
      %2000 = vmatprep.subr.bf16.mxu0 0
      %2001 = vmatpush1.bf16.msra.mxu0 0
      %2002 = vmatprep.subr.bf16.mxu0 0
      %2003 = vmatpush1.bf16.msra.mxu0 0
      %2004 = vmatprep.subr.bf16.mxu0 0
      %2005 = vmatpush1.bf16.msra.mxu0 0
      %2006 = vmatprep.subr.bf16.mxu0 0
      %2007 = vmatpush1.bf16.msra.mxu0 0
      %2008 = vmatprep.subr.bf16.mxu0 0
      %2009 = vmatpush1.bf16.msra.mxu0 0
      %2010 = vmatprep.subr.bf16.mxu0 0
      %2011 = vmatpush1.bf16.msra.mxu0 0
      %2012 = vmatprep.subr.bf16.mxu0 0
      %2013 = vmatpush1.bf16.msra.mxu0 0
      %2014 = vmatprep.subr.bf16.mxu0 0
      %2015 = vmatpush1.bf16.msra.mxu0 0
      %2016 = vmatprep.subr.bf16.mxu0 0
      %2017 = vmatpush1.bf16.msra.mxu0 0
      %2018 = vmatprep.subr.bf16.mxu0 0
      %2019 = vmatpush1.bf16.msra.mxu0 0
      %2020 = vmatprep.subr.bf16.mxu0 0
      %2021 = vmatpush1.bf16.msra.mxu0 0
      %2022 = vmatprep.subr.bf16.mxu0 0
      %2023 = vmatpush1.bf16.msra.mxu0 0
      %2024 = vmatprep.subr.bf16.mxu0 0
      %2025 = vmatpush1.bf16.msra.mxu0 0
      %2026 = vmatprep.subr.bf16.mxu0 0
      %2027 = vmatpush1.bf16.msra.mxu0 0
      %2028 = vmatprep.mubr.bf16.mxu0 0
      %2029 = vmatmul.mubr.bf16.gmra.mrb[0].mxu0 %v1994
      %v2030 = vpop.f32.mrb[0].mxu0
      %v2031 = vadd.f32 0.0, %v2030
      %v2032 = vpop.f32.mrb[0].mxu0
      %v2033 = vpop.f32.mrb[0].mxu0
      %v2034 = vadd.f32 0.0, %v2033
      %v2035 = vpop.f32.mrb[0].mxu0
      %2036 = vdwg.mxu0
      %v2037 = vadd.f32 %v1982, %v2031
      %v2038 = vadd.f32 %v1983, %v2034
      %s2039 = scalar_lea.vmem %s4, 160
      %v2040 = vld [vmem:[%s2039] sm:$0xf]
      %v2041 = vld [vmem:[%s2039 + $0x4] sm:$0xf]
      %v2044 = vunpack.c.l.b16 %v2040
      %v2045 = vunpack.c.l.b16 %v2041
      %v2046 = vpack.c.b16 %v2045, %v2044
      %v2049 = vsel %vm954, %v938, 0
      %2051 = vmatprep.subr.bf16.mxu0 0
      %2052 = vmatpush1.bf16.msra.mxu0 %v2046
      %2053 = vmatprep.subr.bf16.mxu0 0
      %2054 = vmatpush1.bf16.msra.mxu0 0
      %2055 = vmatprep.subr.bf16.mxu0 0
      %2056 = vmatpush1.bf16.msra.mxu0 0
      %2057 = vmatprep.subr.bf16.mxu0 0
      %2058 = vmatpush1.bf16.msra.mxu0 0
      %2059 = vmatprep.subr.bf16.mxu0 0
      %2060 = vmatpush1.bf16.msra.mxu0 0
      %2061 = vmatprep.subr.bf16.mxu0 0
      %2062 = vmatpush1.bf16.msra.mxu0 0
      %2063 = vmatprep.subr.bf16.mxu0 0
      %2064 = vmatpush1.bf16.msra.mxu0 0
      %2065 = vmatprep.subr.bf16.mxu0 0
      %2066 = vmatpush1.bf16.msra.mxu0 0
      %2067 = vmatprep.subr.bf16.mxu0 0
      %2068 = vmatpush1.bf16.msra.mxu0 0
      %2069 = vmatprep.subr.bf16.mxu0 0
      %2070 = vmatpush1.bf16.msra.mxu0 0
      %2071 = vmatprep.subr.bf16.mxu0 0
      %2072 = vmatpush1.bf16.msra.mxu0 0
      %2073 = vmatprep.subr.bf16.mxu0 0
      %2074 = vmatpush1.bf16.msra.mxu0 0
      %2075 = vmatprep.subr.bf16.mxu0 0
      %2076 = vmatpush1.bf16.msra.mxu0 0
      %2077 = vmatprep.subr.bf16.mxu0 0
      %2078 = vmatpush1.bf16.msra.mxu0 0
      %2079 = vmatprep.subr.bf16.mxu0 0
      %2080 = vmatpush1.bf16.msra.mxu0 0
      %2081 = vmatprep.subr.bf16.mxu0 0
      %2082 = vmatpush1.bf16.msra.mxu0 0
      %2083 = vmatprep.mubr.bf16.mxu0 0
      %2084 = vmatmul.mubr.bf16.gmra.mrb[0].mxu0 %v2049
      %v2085 = vpop.f32.mrb[0].mxu0
      %v2086 = vadd.f32 0.0, %v2085
      %v2087 = vpop.f32.mrb[0].mxu0
      %v2088 = vpop.f32.mrb[0].mxu0
      %v2089 = vadd.f32 0.0, %v2088
      %v2090 = vpop.f32.mrb[0].mxu0
      %2091 = vdwg.mxu0
      %v2092 = vadd.f32 %v2037, %v2086
      %v2093 = vadd.f32 %v2038, %v2089
      %s2094 = scalar_lea.vmem %s4, 168
      %v2095 = vld [vmem:[%s2094] sm:$0xf]
      %v2096 = vld [vmem:[%s2094 + $0x4] sm:$0xf]
      %v2099 = vunpack.c.l.b16 %v2095
      %v2100 = vunpack.c.l.b16 %v2096
      %v2101 = vpack.c.b16 %v2100, %v2099
      %v2104 = vsel %vm954, %v939, 0
      %2106 = vmatprep.subr.bf16.mxu0 0
      %2107 = vmatpush1.bf16.msra.mxu0 %v2101
      %2108 = vmatprep.subr.bf16.mxu0 0
      %2109 = vmatpush1.bf16.msra.mxu0 0
      %2110 = vmatprep.subr.bf16.mxu0 0
      %2111 = vmatpush1.bf16.msra.mxu0 0
      %2112 = vmatprep.subr.bf16.mxu0 0
      %2113 = vmatpush1.bf16.msra.mxu0 0
      %2114 = vmatprep.subr.bf16.mxu0 0
      %2115 = vmatpush1.bf16.msra.mxu0 0
      %2116 = vmatprep.subr.bf16.mxu0 0
      %2117 = vmatpush1.bf16.msra.mxu0 0
      %2118 = vmatprep.subr.bf16.mxu0 0
      %2119 = vmatpush1.bf16.msra.mxu0 0
      %2120 = vmatprep.subr.bf16.mxu0 0
      %2121 = vmatpush1.bf16.msra.mxu0 0
      %2122 = vmatprep.subr.bf16.mxu0 0
      %2123 = vmatpush1.bf16.msra.mxu0 0
      %2124 = vmatprep.subr.bf16.mxu0 0
      %2125 = vmatpush1.bf16.msra.mxu0 0
      %2126 = vmatprep.subr.bf16.mxu0 0
      %2127 = vmatpush1.bf16.msra.mxu0 0
      %2128 = vmatprep.subr.bf16.mxu0 0
      %2129 = vmatpush1.bf16.msra.mxu0 0
      %2130 = vmatprep.subr.bf16.mxu0 0
      %2131 = vmatpush1.bf16.msra.mxu0 0
      %2132 = vmatprep.subr.bf16.mxu0 0
      %2133 = vmatpush1.bf16.msra.mxu0 0
      %2134 = vmatprep.subr.bf16.mxu0 0
      %2135 = vmatpush1.bf16.msra.mxu0 0
      %2136 = vmatprep.subr.bf16.mxu0 0
      %2137 = vmatpush1.bf16.msra.mxu0 0
      %2138 = vmatprep.mubr.bf16.mxu0 0
      %2139 = vmatmul.mubr.bf16.gmra.mrb[0].mxu0 %v2104
      %v2140 = vpop.f32.mrb[0].mxu0
      %v2141 = vadd.f32 0.0, %v2140
      %v2142 = vpop.f32.mrb[0].mxu0
      %v2143 = vpop.f32.mrb[0].mxu0
      %v2144 = vadd.f32 0.0, %v2143
      %v2145 = vpop.f32.mrb[0].mxu0
      %2146 = vdwg.mxu0
      %v2147 = vadd.f32 %v2092, %v2141
      %v2148 = vadd.f32 %v2093, %v2144
      %s2149 = scalar_lea.vmem %s4, 176
      %v2150 = vld [vmem:[%s2149] sm:$0xf]
      %v2151 = vld [vmem:[%s2149 + $0x4] sm:$0xf]
      %v2154 = vunpack.c.l.b16 %v2150
      %v2155 = vunpack.c.l.b16 %v2151
      %v2156 = vpack.c.b16 %v2155, %v2154
      %v2159 = vsel %vm954, %v940, 0
      %2161 = vmatprep.subr.bf16.mxu0 0
      %2162 = vmatpush1.bf16.msra.mxu0 %v2156
      %2163 = vmatprep.subr.bf16.mxu0 0
      %2164 = vmatpush1.bf16.msra.mxu0 0
      %2165 = vmatprep.subr.bf16.mxu0 0
      %2166 = vmatpush1.bf16.msra.mxu0 0
      %2167 = vmatprep.subr.bf16.mxu0 0
      %2168 = vmatpush1.bf16.msra.mxu0 0
      %2169 = vmatprep.subr.bf16.mxu0 0
      %2170 = vmatpush1.bf16.msra.mxu0 0
      %2171 = vmatprep.subr.bf16.mxu0 0
      %2172 = vmatpush1.bf16.msra.mxu0 0
      %2173 = vmatprep.subr.bf16.mxu0 0
      %2174 = vmatpush1.bf16.msra.mxu0 0
      %2175 = vmatprep.subr.bf16.mxu0 0
      %2176 = vmatpush1.bf16.msra.mxu0 0
      %2177 = vmatprep.subr.bf16.mxu0 0
      %2178 = vmatpush1.bf16.msra.mxu0 0
      %2179 = vmatprep.subr.bf16.mxu0 0
      %2180 = vmatpush1.bf16.msra.mxu0 0
      %2181 = vmatprep.subr.bf16.mxu0 0
      %2182 = vmatpush1.bf16.msra.mxu0 0
      %2183 = vmatprep.subr.bf16.mxu0 0
      %2184 = vmatpush1.bf16.msra.mxu0 0
      %2185 = vmatprep.subr.bf16.mxu0 0
      %2186 = vmatpush1.bf16.msra.mxu0 0
      %2187 = vmatprep.subr.bf16.mxu0 0
      %2188 = vmatpush1.bf16.msra.mxu0 0
      %2189 = vmatprep.subr.bf16.mxu0 0
      %2190 = vmatpush1.bf16.msra.mxu0 0
      %2191 = vmatprep.subr.bf16.mxu0 0
      %2192 = vmatpush1.bf16.msra.mxu0 0
      %2193 = vmatprep.mubr.bf16.mxu0 0
      %2194 = vmatmul.mubr.bf16.gmra.mrb[0].mxu0 %v2159
      %v2195 = vpop.f32.mrb[0].mxu0
      %v2196 = vadd.f32 0.0, %v2195
      %v2197 = vpop.f32.mrb[0].mxu0
      %v2198 = vpop.f32.mrb[0].mxu0
      %v2199 = vadd.f32 0.0, %v2198
      %v2200 = vpop.f32.mrb[0].mxu0
      %2201 = vdwg.mxu0
      %v2202 = vadd.f32 %v2147, %v2196
      %v2203 = vadd.f32 %v2148, %v2199
      %s2204 = scalar_lea.vmem %s4, 184
      %v2205 = vld [vmem:[%s2204] sm:$0xf]
      %v2206 = vld [vmem:[%s2204 + $0x4] sm:$0xf]
      %v2209 = vunpack.c.l.b16 %v2205
      %v2210 = vunpack.c.l.b16 %v2206
      %v2211 = vpack.c.b16 %v2210, %v2209
      %v2214 = vsel %vm954, %v941, 0
      %2216 = vmatprep.subr.bf16.mxu0 0
      %2217 = vmatpush1.bf16.msra.mxu0 %v2211
      %2218 = vmatprep.subr.bf16.mxu0 0
      %2219 = vmatpush1.bf16.msra.mxu0 0
      %2220 = vmatprep.subr.bf16.mxu0 0
      %2221 = vmatpush1.bf16.msra.mxu0 0
      %2222 = vmatprep.subr.bf16.mxu0 0
      %2223 = vmatpush1.bf16.msra.mxu0 0
      %2224 = vmatprep.subr.bf16.mxu0 0
      %2225 = vmatpush1.bf16.msra.mxu0 0
      %2226 = vmatprep.subr.bf16.mxu0 0
      %2227 = vmatpush1.bf16.msra.mxu0 0
      %2228 = vmatprep.subr.bf16.mxu0 0
      %2229 = vmatpush1.bf16.msra.mxu0 0
      %2230 = vmatprep.subr.bf16.mxu0 0
      %2231 = vmatpush1.bf16.msra.mxu0 0
      %2232 = vmatprep.subr.bf16.mxu0 0
      %2233 = vmatpush1.bf16.msra.mxu0 0
      %2234 = vmatprep.subr.bf16.mxu0 0
      %2235 = vmatpush1.bf16.msra.mxu0 0
      %2236 = vmatprep.subr.bf16.mxu0 0
      %2237 = vmatpush1.bf16.msra.mxu0 0
      %2238 = vmatprep.subr.bf16.mxu0 0
      %2239 = vmatpush1.bf16.msra.mxu0 0
      %2240 = vmatprep.subr.bf16.mxu0 0
      %2241 = vmatpush1.bf16.msra.mxu0 0
      %2242 = vmatprep.subr.bf16.mxu0 0
      %2243 = vmatpush1.bf16.msra.mxu0 0
      %2244 = vmatprep.subr.bf16.mxu0 0
      %2245 = vmatpush1.bf16.msra.mxu0 0
      %2246 = vmatprep.subr.bf16.mxu0 0
      %2247 = vmatpush1.bf16.msra.mxu0 0
      %2248 = vmatprep.mubr.bf16.mxu0 0
      %2249 = vmatmul.mubr.bf16.gmra.mrb[0].mxu0 %v2214
      %v2250 = vpop.f32.mrb[0].mxu0
      %v2251 = vadd.f32 0.0, %v2250
      %v2252 = vpop.f32.mrb[0].mxu0
      %v2253 = vpop.f32.mrb[0].mxu0
      %v2254 = vadd.f32 0.0, %v2253
      %v2255 = vpop.f32.mrb[0].mxu0
      %2256 = vdwg.mxu0
      %v2257 = vadd.f32 %v2202, %v2251
      %v2258 = vadd.f32 %v2203, %v2254
      %s2259 = scalar_lea.vmem %s4, 192
      %v2260 = vld [vmem:[%s2259] sm:$0xf]
      %v2261 = vld [vmem:[%s2259 + $0x4] sm:$0xf]
      %v2264 = vunpack.c.l.b16 %v2260
      %v2265 = vunpack.c.l.b16 %v2261
      %v2266 = vpack.c.b16 %v2265, %v2264
      %v2269 = vsel %vm954, %v942, 0
      %2271 = vmatprep.subr.bf16.mxu0 0
      %2272 = vmatpush1.bf16.msra.mxu0 %v2266
      %2273 = vmatprep.subr.bf16.mxu0 0
      %2274 = vmatpush1.bf16.msra.mxu0 0
      %2275 = vmatprep.subr.bf16.mxu0 0
      %2276 = vmatpush1.bf16.msra.mxu0 0
      %2277 = vmatprep.subr.bf16.mxu0 0
      %2278 = vmatpush1.bf16.msra.mxu0 0
      %2279 = vmatprep.subr.bf16.mxu0 0
      %2280 = vmatpush1.bf16.msra.mxu0 0
      %2281 = vmatprep.subr.bf16.mxu0 0
      %2282 = vmatpush1.bf16.msra.mxu0 0
      %2283 = vmatprep.subr.bf16.mxu0 0
      %2284 = vmatpush1.bf16.msra.mxu0 0
      %2285 = vmatprep.subr.bf16.mxu0 0
      %2286 = vmatpush1.bf16.msra.mxu0 0
      %2287 = vmatprep.subr.bf16.mxu0 0
      %2288 = vmatpush1.bf16.msra.mxu0 0
      %2289 = vmatprep.subr.bf16.mxu0 0
      %2290 = vmatpush1.bf16.msra.mxu0 0
      %2291 = vmatprep.subr.bf16.mxu0 0
      %2292 = vmatpush1.bf16.msra.mxu0 0
      %2293 = vmatprep.subr.bf16.mxu0 0
      %2294 = vmatpush1.bf16.msra.mxu0 0
      %2295 = vmatprep.subr.bf16.mxu0 0
      %2296 = vmatpush1.bf16.msra.mxu0 0
      %2297 = vmatprep.subr.bf16.mxu0 0
      %2298 = vmatpush1.bf16.msra.mxu0 0
      %2299 = vmatprep.subr.bf16.mxu0 0
      %2300 = vmatpush1.bf16.msra.mxu0 0
      %2301 = vmatprep.subr.bf16.mxu0 0
      %2302 = vmatpush1.bf16.msra.mxu0 0
      %2303 = vmatprep.mubr.bf16.mxu0 0
      %2304 = vmatmul.mubr.bf16.gmra.mrb[0].mxu0 %v2269
      %v2305 = vpop.f32.mrb[0].mxu0
      %v2306 = vadd.f32 0.0, %v2305
      %v2307 = vpop.f32.mrb[0].mxu0
      %v2308 = vpop.f32.mrb[0].mxu0
      %v2309 = vadd.f32 0.0, %v2308
      %v2310 = vpop.f32.mrb[0].mxu0
      %2311 = vdwg.mxu0
      %v2312 = vadd.f32 %v2257, %v2306
      %v2313 = vadd.f32 %v2258, %v2309
      %v2314 = vld [vmem:[%s5] sm:$0x1]
      %v2316 = vlaneseq
      %v2317 = vshrl.u32 %v2316, 7
      %v2318 = vsub.s32 0, %v2317
      %v2319 = vrot.slane %v2314, %v2318
      %v2321 = vadd.f32 %v2312, %v2319
      %v2322 = vadd.f32 %v2313, %v2319
      %v2323 = vmax.f32 %v2321, 0.0
      %v2324 = vmax.f32 %v2322, 0.0
      %2325 = vst [vmem:[%s251] sm:$0xff] %v2323
      %2326 = vst [vmem:[%s251 + $0x8] sm:$0xff] %v2324
      %p2327 = scmp.lt.s32.totalorder %s17, 1
      %s2328 = scalar_select %p2327, %s17, 1
      %s2329 = smul.addr %s2328, 2
      %s2330 = smul.addr %s2329, 8
      %s2331 = scalar_lea.vmem %s6, %s2330
      // Predicated region
      $region45: #{lenet_conv_bottom_forward.1} parent=43 // pred_check
        %p2332 = pneg %p166
      $region46: #{lenet_conv_bottom_forward.1} parent=43 // pred_check_branch
        %2334 = sbr.rel (%p2332) target = $region48
      $region47: #{lenet_conv_bottom_forward.1} parent=43 // pred_region
        _
      $region48: #{lenet_conv_bottom_forward.1} parent=43 // pred_fallthru
        _
    $region44: #{lenet_conv_bottom_forward.1} parent=5 // pred_fallthru
      _
    %p2335 = scmp.le.s32.totalorder 2, %s12
    // Predicated region
    $region49: #{lenet_conv_bottom_forward.1} parent=5 // pred_check
      %p2336 = pneg %p2335
    $region50: #{lenet_conv_bottom_forward.1} parent=5 // pred_check_branch
      %2338 = sbr.rel (%p2336) target = $region52
    $region51: #{lenet_conv_bottom_forward.1} parent=5 // pred_region
      %s2339 = ssub.s32 %s12, 2
      // Predicated region
      $region53: #{lenet_conv_bottom_forward.1} parent=51 // pred_check
        %p2340 = pneg %p172
      $region54: #{lenet_conv_bottom_forward.1} parent=51 // pred_check_branch
        %2342 = sbr.rel (%p2340) target = $region56
      $region55: #{lenet_conv_bottom_forward.1} parent=51 // pred_region
        %p2343 = scmp.lt.s32.totalorder %s18, 1
        %s2344 = scalar_select %p2343, %s18, 1
        %s2345 = smul.addr %s2344, 2
        %s2346 = smul.addr %s2345, 8
        %s2347 = scalar_lea.vmem %s6, %s2346
      $region56: #{lenet_conv_bottom_forward.1} parent=51 // pred_fallthru
        _
    $region52: #{lenet_conv_bottom_forward.1} parent=5 // pred_fallthru
      _
  $region6: #{lenet_conv_bottom_forward.1} parent=0 // loop_footer
    %s16 = sadd.s32 1, %s12
  $region7: #{lenet_conv_bottom_forward.1} parent=0 // loop_footer_branch
    %11 = sbr.rel target = $region3
  $region8: #{lenet_conv_bottom_forward.1} parent=0 // loop_exit
    _

</llo_original>
